<compile_context>
chip_gen: v5e
topology: v5e:2x2
jax: 0.10.0
libtpu: 0.0.40
codegen_flags: <defaults>
</compile_context>

<pallas_src>
import functools

import jax
import jax.numpy as jnp
from jax.experimental import pallas as pl
from jax.experimental.pallas import tpu as pltpu

_EPS2 = 1e-24  # (1e-12)^2 -> identical to F.normalize(dim=1, eps=1e-12)


# ----------------------------------------------------------------------------
# Kernel 1 (one-shot): y embedding -> inf->1 -> L2 normalize -> transposed out
#   y_ref   : [Ny_pad, K]       y crops (GAP folded into weights)
#   wb_ref  : [K, D_pad]        embedding weights (model b), GAP-folded
#   bb_ref  : [1, D_pad]        embedding bias (f32, row broadcast)
#   ynT_ref : [D_pad, Ny_pad]   normalized features, transposed (mm dtype)
# ----------------------------------------------------------------------------
def _y_feature_kernel(y_ref, wb_ref, bb_ref, ynT_ref, *, n_valid):
    yf = jnp.dot(y_ref[...], wb_ref[...],
                 preferred_element_type=jnp.float32) + bb_ref[...]
    yf = jnp.where(jnp.isinf(yf), jnp.float32(1.0), yf)
    inv_n = jax.lax.rsqrt(
        jnp.maximum(jnp.sum(yf * yf, axis=1, keepdims=True), jnp.float32(_EPS2)))
    yn = yf * inv_n
    # Zero padded rows so padded similarity columns are exact zeros (not
    # bias-only junk).
    row_ok = jax.lax.broadcasted_iota(jnp.int32, yn.shape, 0) < n_valid
    yn = jnp.where(row_ok, yn, jnp.float32(0.0))
    # Single small [Ny_pad, D_pad] -> [D_pad, Ny_pad] transpose so the main
    # kernel's similarity matmul is a native [M,K]x[K,N] MXU op every step.
    ynT_ref[...] = yn.T.astype(ynT_ref.dtype)


# ----------------------------------------------------------------------------
# Kernel 2 (row-tiled, "parallel"): x embedding + normalize + similarity + ReLU
#   x_ref   : [tile_nx, K]      x crop row tile (GAP folded into weights)
#   wa_ref  : [K, D_pad]        embedding weights (model a), GAP-folded
#   ba_ref  : [1, D_pad]        embedding bias (f32, row broadcast)
#   ynT_ref : [D_pad, Ny_pad]   normalized y features, transposed
#   o_ref   : [tile_nx, Ny_pad] ReLU(cosine similarity), f32
# ----------------------------------------------------------------------------
def _x_sim_kernel(x_ref, wa_ref, ba_ref, ynT_ref, o_ref):
    xf = jnp.dot(x_ref[...], wa_ref[...],
                 preferred_element_type=jnp.float32) + ba_ref[...]
    xf = jnp.where(jnp.isinf(xf), jnp.float32(1.0), xf)
    inv_n = jax.lax.rsqrt(
        jnp.maximum(jnp.sum(xf * xf, axis=1, keepdims=True), jnp.float32(_EPS2)))
    xn = (xf * inv_n).astype(ynT_ref.dtype)   # bf16 on TPU -> full MXU rate
    sim = jnp.dot(xn, ynT_ref[...], preferred_element_type=jnp.float32)
    o_ref[...] = jnp.maximum(sim, jnp.float32(0.0))


# ----------------------------------------------------------------------------
# Wrapper
# ----------------------------------------------------------------------------
def _round_up(a, m):
    return (a + m - 1) // m * m


def _pick_row_tile(n, max_tile):
    # Multiple of 16 so bf16 sublane packing is never sub-tile.
    assert max_tile % 16 == 0
    n16 = _round_up(max(n, 1), 16)
    if n16 <= max_tile:
        return n16, n16
    return max_tile, _round_up(n, max_tile)


def fastreid_with_post(x, y, params_a, params_b, *, max_row_tile=512):
    Nx, C, H, W = x.shape
    Ny = y.shape[0]
    HW = H * W
    K = C * HW
    D = params_a["w"].shape[1]

    D_pad = _round_up(D, 128)            # lane-dense feature dim
    Ny_pad = _round_up(Ny, 128)          # lane-dense (unmasked) output stores
    tile_nx, Nx_pad = _pick_row_tile(Nx, max_row_tile)

    # MXU operand dtype: bf16 on a real TPU (halves HBM->VMEM DMA bytes and
    # slab VMEM, f32 accumulation on the MXU); f32 elsewhere, since CPU /
    # interpret executors reject BF16xBF16=F32 dots.  Biases and all
    # post-processing math stay f32.
    on_tpu = jax.default_backend() == "tpu"
    mm_dtype = jnp.bfloat16 if on_tpu else jnp.float32
    mm_size = jnp.dtype(mm_dtype).itemsize

    # Fold the global-average-pool into the embedding weights (host-side,
    # once): w_eff[c*HW + s, d] = w[c, d] / HW (matches NCHW reshape order),
    # so the backbone is one lane-dense [N, C*HW] @ [C*HW, D_pad] matmul.
    # Fine at these crop sizes (K = 768); for large HW pool over HW first and
    # shrink K to C_pad instead.
    w_eff_a = jnp.repeat(params_a["w"] / HW, HW, axis=0)                 # [K, D]
    w_eff_b = jnp.repeat(params_b["w"] / HW, HW, axis=0)                 # [K, D]

    wa = jnp.pad(w_eff_a, ((0, 0), (0, D_pad - D))).astype(mm_dtype)     # [K, D_pad]
    wb = jnp.pad(w_eff_b, ((0, 0), (0, D_pad - D))).astype(mm_dtype)     # [K, D_pad]
    ba = jnp.pad(params_a["b"], (0, D_pad - D)).reshape(1, D_pad)        # f32
    bb = jnp.pad(params_b["b"], (0, D_pad - D)).reshape(1, D_pad)        # f32

    x_flat = jnp.pad(x.reshape(Nx, K),
                     ((0, Nx_pad - Nx), (0, 0))).astype(mm_dtype)        # [Nx_pad, K]
    y_flat = jnp.pad(y.reshape(Ny, K),
                     ((0, Ny_pad - Ny), (0, 0))).astype(mm_dtype)        # [Ny_pad, K]

    # --- Kernel 1: normalized y features, pre-transposed to [D_pad, Ny_pad].
    ynT = pl.pallas_call(
        functools.partial(_y_feature_kernel, n_valid=Ny),
        out_shape=jax.ShapeDtypeStruct((D_pad, Ny_pad), mm_dtype),
        grid=(1,),
        in_specs=[
            pl.BlockSpec((Ny_pad, K), lambda i: (0, 0)),
            pl.BlockSpec((K, D_pad), lambda i: (0, 0)),
            pl.BlockSpec((1, D_pad), lambda i: (0, 0)),
        ],
        out_specs=pl.BlockSpec((D_pad, Ny_pad), lambda i: (0, 0)),
        compiler_params=pltpu.CompilerParams(
            dimension_semantics=("arbitrary",)),
    )(y_flat, wb, bb)

    # --- Kernel 2: x features + similarity, tiled over Nx rows. -------------
    # Explicit VMEM budget (inputs/outputs double-buffered by default); the
    # binding constraint is v7x's 64 MiB physical VMEM (32 MiB scoped default).
    vmem_need = 2 * (tile_nx * K * mm_size          # streamed x tile
                     + K * D_pad * mm_size          # wa (grid-invariant)
                     + D_pad * 4                    # ba
                     + D_pad * Ny_pad * mm_size     # ynT (grid-invariant)
                     + tile_nx * Ny_pad * 4)        # f32 output tile
    vmem_limit = int(min(vmem_need + (16 << 20), 64 << 20))

    # wa/ba/ynT are grid-invariant (index_map constant); at these sizes their
    # extra pipeline buffer is <1 MiB, so they keep default buffering.  Switch
    # them to pipeline_mode=pl.Buffered(1) if K or Ny grow.
    sim_pad = pl.pallas_call(
        _x_sim_kernel,
        out_shape=jax.ShapeDtypeStruct((Nx_pad, Ny_pad), jnp.float32),
        grid=(Nx_pad // tile_nx,),
        in_specs=[
            pl.BlockSpec((tile_nx, K), lambda i: (i, 0)),      # x row tile
            pl.BlockSpec((K, D_pad), lambda i: (0, 0)),        # wa
            pl.BlockSpec((1, D_pad), lambda i: (0, 0)),        # ba
            pl.BlockSpec((D_pad, Ny_pad), lambda i: (0, 0)),   # ynT
        ],
        out_specs=pl.BlockSpec((tile_nx, Ny_pad), lambda i: (i, 0)),
        compiler_params=pltpu.CompilerParams(
            # No cross-step state -> row tiles are independent; "parallel"
            # lets v7x's two TensorCores split them (no effect on v5e/v6e).
            dimension_semantics=("parallel",),
            vmem_limit_bytes=vmem_limit,
        ),
    )(x_flat, wa, ba, ynT)

    return sim_pad[:Nx, :Ny]


# ----------------------------------------------------------------------------
# Pure-JAX reference (f32) for correctness checking.
# ----------------------------------------------------------------------------
def _reference(x, y, params_a, params_b):
    def feat(z, p):
        pooled = jnp.mean(z.reshape(z.shape[0], z.shape[1], -1), axis=-1)
        f = pooled @ p["w"] + p["b"]
        f = jnp.where(jnp.isinf(f), jnp.float32(1.0), f)
        n = jnp.maximum(jnp.sqrt(jnp.sum(f * f, axis=1, keepdims=True)), 1e-12)
        return f / n

    xf = feat(x, params_a)
    yf = feat(y, params_b)
    return jnp.maximum(xf @ yf.T, 0.0)


def _make_params(key, C, D):
    kw, kb = jax.random.split(key)
    return {
        "w": jax.random.normal(kw, (C, D), jnp.float32) * 0.1,
        "b": jax.random.normal(kb, (D,), jnp.float32) * 0.01,
    }


if __name__ == "__main__":
    # Small shapes consistent with the module's forward:
    #   x: [Nx, 3, H, W] crops, y: [Ny, 3, H, W] crops, embedding dim D.
    # (Nx/Ny/D deliberately not 128-aligned to exercise the padding path.)
    Nx, Ny, C, H, W, D = 6, 5, 3, 16, 16, 64

    key = jax.random.PRNGKey(0)
    kx, ky, ka, kb = jax.random.split(key, 4)

    x = jax.random.normal(kx, (Nx, C, H, W), jnp.float32)
    y = jax.random.normal(ky, (Ny, C, H, W), jnp.float32)

    params_a = _make_params(ka, C, D)   # frid_model_a (deterministic init)
    params_b = _make_params(kb, C, D)   # frid_model_b (deterministic init)

    fwd = jax.jit(fastreid_with_post)
    sim = jax.block_until_ready(fwd(x, y, params_a, params_b))
    ref = jax.block_until_ready(_reference(x, y, params_a, params_b))

    assert sim.shape == (Nx, Ny)
    assert sim.dtype == jnp.float32
    assert bool(jnp.all(sim >= 0.0))            # ReLU output
    assert bool(jnp.all(jnp.isfinite(sim)))     # inf handling + normalize
    max_err = float(jnp.max(jnp.abs(sim - ref)))
    assert max_err < 3e-2, max_err              # bf16 backbone-matmul tolerance

    print("KERNEL_OK")
</pallas_src>

<mosaic_0001>
module attributes {stable_mosaic.version = 11 : i64} {
  func.func @_y_feature_kernel(%arg0: i32, %arg1: memref<128x768xf32, #tpu.memory_space<vmem>>, %arg2: memref<768x128xf32, #tpu.memory_space<vmem>>, %arg3: memref<1x128xf32, #tpu.memory_space<vmem>>, %arg4: memref<128x128xf32, #tpu.memory_space<vmem>>) attributes {dimension_semantics = [#tpu.dimension_semantics<arbitrary>], iteration_bounds = array<i64: 1>, scalar_prefetch = 0 : i64, scratch_operands = 0 : i64, tpu.core_type = #tpu.core_type<tc>, window_params = [{pipeline_mode = #tpu.pipeline_mode<synchronous>, transform_indices = @transform_0, window_bounds = array<i64: 128, 768>}, {pipeline_mode = #tpu.pipeline_mode<synchronous>, transform_indices = @transform_1, window_bounds = array<i64: 768, 128>}, {pipeline_mode = #tpu.pipeline_mode<synchronous>, transform_indices = @transform_2, window_bounds = array<i64: 1, 128>}, {pipeline_mode = #tpu.pipeline_mode<synchronous>, transform_indices = @transform_3, window_bounds = array<i64: 128, 128>}]} {
    %c0 = arith.constant 0 : index
    %c0_0 = arith.constant 0 : index
    %0 = vector.load %arg1[%c0, %c0_0] : memref<128x768xf32, #tpu.memory_space<vmem>>, vector<128x768xf32>
    %c0_1 = arith.constant 0 : index
    %c0_2 = arith.constant 0 : index
    %1 = vector.load %arg2[%c0_1, %c0_2] : memref<768x128xf32, #tpu.memory_space<vmem>>, vector<768x128xf32>
    %cst = arith.constant dense<0.000000e+00> : vector<128x128xf32>
    %2 = tpu.matmul %0, %1, %cst {dimension_numbers = #tpu.dot_dimension_numbers<[1], [0], [0], [1], [0, 0, 1, 1], [], []>} : vector<128x768xf32>, vector<768x128xf32>, vector<128x128xf32> -> vector<128x128xf32>
    %c0_3 = arith.constant 0 : index
    %c0_4 = arith.constant 0 : index
    %3 = vector.load %arg3[%c0_3, %c0_4] : memref<1x128xf32, #tpu.memory_space<vmem>>, vector<1x128xf32>
    %4 = vector.broadcast %3 : vector<1x128xf32> to vector<128x128xf32>
    %5 = arith.addf %2, %4 : vector<128x128xf32>
    %6 = math.absf %5 : vector<128x128xf32>
    %cst_5 = arith.constant 0x7F800000 : f32
    %7 = vector.broadcast %cst_5 : f32 to vector<128x128xf32>
    %8 = arith.cmpf oeq, %6, %7 : vector<128x128xf32>
    %cst_6 = arith.constant 1.000000e+00 : f32
    %9 = vector.broadcast %cst_6 : f32 to vector<128x128xf32>
    %10 = arith.select %8, %9, %5 : vector<128x128xi1>, vector<128x128xf32>
    %11 = arith.mulf %10, %10 : vector<128x128xf32>
    %cst_7 = arith.constant dense<0.000000e+00> : vector<128xf32>
    %12 = vector.multi_reduction <add>, %11, %cst_7 [1] : vector<128x128xf32> to vector<128xf32>
    %13 = vector.shape_cast %12 : vector<128xf32> to vector<128x1xf32>
    %cst_8 = arith.constant 1.000000e-24 : f32
    %14 = vector.broadcast %cst_8 : f32 to vector<128x1xf32>
    %15 = arith.maximumf %13, %14 : vector<128x1xf32>
    %16 = math.rsqrt %15 : vector<128x1xf32>
    %17 = vector.broadcast %16 : vector<128x1xf32> to vector<128x128xf32>
    %18 = arith.mulf %10, %17 : vector<128x128xf32>
    %19 = tpu.iota {dimensions = array<i32: 0>} : vector<128x128xi32>
    %c5_i32 = arith.constant 5 : i32
    %20 = vector.broadcast %c5_i32 : i32 to vector<128x128xi32>
    %21 = arith.cmpi slt, %19, %20 : vector<128x128xi32>
    %cst_9 = arith.constant 0.000000e+00 : f32
    %22 = vector.broadcast %cst_9 : f32 to vector<128x128xf32>
    %23 = arith.select %21, %18, %22 : vector<128x128xi1>, vector<128x128xf32>
    %24 = tpu.transpose %23, [1, 0] : vector<128x128xf32> -> vector<128x128xf32>
    %c0_10 = arith.constant 0 : index
    %c0_11 = arith.constant 0 : index
    %25 = vector.load %arg4[%c0_10, %c0_11] : memref<128x128xf32, #tpu.memory_space<vmem>>, vector<128x128xf32>
    tpu.vector_store %arg4[%c0_10, %c0_11], %24 {strides = array<i32>} : memref<128x128xf32, #tpu.memory_space<vmem>>, vector<128x128xf32>,
    return
  }
  func.func @transform_0(%arg0: i32) -> (i32, i32) {
    %c0_i32 = arith.constant 0 : i32
    %c0_i32_0 = arith.constant 0 : i32
    %c0_i32_1 = arith.constant 0 : i32
    return %c0_i32, %c0_i32_0 : i32, i32
  }
  func.func @transform_1(%arg0: i32) -> (i32, i32) {
    %c0_i32 = arith.constant 0 : i32
    %c0_i32_0 = arith.constant 0 : i32
    %c0_i32_1 = arith.constant 0 : i32
    return %c0_i32, %c0_i32_0 : i32, i32
  }
  func.func @transform_2(%arg0: i32) -> (i32, i32) {
    %c0_i32 = arith.constant 0 : i32
    %c0_i32_0 = arith.constant 0 : i32
    %c0_i32_1 = arith.constant 0 : i32
    return %c0_i32, %c0_i32_0 : i32, i32
  }
  func.func @transform_3(%arg0: i32) -> (i32, i32) {
    %c0_i32 = arith.constant 0 : i32
    %c0_i32_0 = arith.constant 0 : i32
    %c0_i32_1 = arith.constant 0 : i32
    return %c0_i32, %c0_i32_0 : i32, i32
  }
}

module attributes {stable_mosaic.version = 11 : i64} {
  func.func @_x_sim_kernel(%arg0: i32, %arg1: memref<16x768xf32, #tpu.memory_space<vmem>>, %arg2: memref<768x128xf32, #tpu.memory_space<vmem>>, %arg3: memref<1x128xf32, #tpu.memory_space<vmem>>, %arg4: memref<128x128xf32, #tpu.memory_space<vmem>>, %arg5: memref<16x128xf32, #tpu.memory_space<vmem>>) attributes {dimension_semantics = [#tpu.dimension_semantics<parallel>], iteration_bounds = array<i64: 1>, scalar_prefetch = 0 : i64, scratch_operands = 0 : i64, tpu.core_type = #tpu.core_type<tc>, window_params = [{transform_indices = @transform_0, window_bounds = array<i64: 16, 768>}, {pipeline_mode = #tpu.pipeline_mode<synchronous>, transform_indices = @transform_1, window_bounds = array<i64: 768, 128>}, {pipeline_mode = #tpu.pipeline_mode<synchronous>, transform_indices = @transform_2, window_bounds = array<i64: 1, 128>}, {pipeline_mode = #tpu.pipeline_mode<synchronous>, transform_indices = @transform_3, window_bounds = array<i64: 128, 128>}, {transform_indices = @transform_4, window_bounds = array<i64: 16, 128>}]} {
    %c0 = arith.constant 0 : index
    %c0_0 = arith.constant 0 : index
    %0 = vector.load %arg1[%c0, %c0_0] : memref<16x768xf32, #tpu.memory_space<vmem>>, vector<16x768xf32>
    %c0_1 = arith.constant 0 : index
    %c0_2 = arith.constant 0 : index
    %1 = vector.load %arg2[%c0_1, %c0_2] : memref<768x128xf32, #tpu.memory_space<vmem>>, vector<768x128xf32>
    %cst = arith.constant dense<0.000000e+00> : vector<16x128xf32>
    %2 = tpu.matmul %0, %1, %cst {dimension_numbers = #tpu.dot_dimension_numbers<[1], [0], [0], [1], [0, 0, 1, 1], [], []>} : vector<16x768xf32>, vector<768x128xf32>, vector<16x128xf32> -> vector<16x128xf32>
    %c0_3 = arith.constant 0 : index
    %c0_4 = arith.constant 0 : index
    %3 = vector.load %arg3[%c0_3, %c0_4] : memref<1x128xf32, #tpu.memory_space<vmem>>, vector<1x128xf32>
    %4 = vector.broadcast %3 : vector<1x128xf32> to vector<16x128xf32>
    %5 = arith.addf %2, %4 : vector<16x128xf32>
    %6 = math.absf %5 : vector<16x128xf32>
    %cst_5 = arith.constant 0x7F800000 : f32
    %7 = vector.broadcast %cst_5 : f32 to vector<16x128xf32>
    %8 = arith.cmpf oeq, %6, %7 : vector<16x128xf32>
    %cst_6 = arith.constant 1.000000e+00 : f32
    %9 = vector.broadcast %cst_6 : f32 to vector<16x128xf32>
    %10 = arith.select %8, %9, %5 : vector<16x128xi1>, vector<16x128xf32>
    %11 = arith.mulf %10, %10 : vector<16x128xf32>
    %cst_7 = arith.constant dense<0.000000e+00> : vector<16xf32>
    %12 = vector.multi_reduction <add>, %11, %cst_7 [1] : vector<16x128xf32> to vector<16xf32>
    %13 = vector.shape_cast %12 : vector<16xf32> to vector<16x1xf32>
    %cst_8 = arith.constant 1.000000e-24 : f32
    %14 = vector.broadcast %cst_8 : f32 to vector<16x1xf32>
    %15 = arith.maximumf %13, %14 : vector<16x1xf32>
    %16 = math.rsqrt %15 : vector<16x1xf32>
    %17 = vector.broadcast %16 : vector<16x1xf32> to vector<16x128xf32>
    %18 = arith.mulf %10, %17 : vector<16x128xf32>
    %c0_9 = arith.constant 0 : index
    %c0_10 = arith.constant 0 : index
    %19 = vector.load %arg4[%c0_9, %c0_10] : memref<128x128xf32, #tpu.memory_space<vmem>>, vector<128x128xf32>
    %cst_11 = arith.constant dense<0.000000e+00> : vector<16x128xf32>
    %20 = tpu.matmul %18, %19, %cst_11 {dimension_numbers = #tpu.dot_dimension_numbers<[1], [0], [0], [1], [0, 0, 1, 1], [], []>} : vector<16x128xf32>, vector<128x128xf32>, vector<16x128xf32> -> vector<16x128xf32>
    %cst_12 = arith.constant 0.000000e+00 : f32
    %21 = vector.broadcast %cst_12 : f32 to vector<16x128xf32>
    %22 = arith.maximumf %20, %21 : vector<16x128xf32>
    %c0_13 = arith.constant 0 : index
    %c0_14 = arith.constant 0 : index
    %23 = vector.load %arg5[%c0_13, %c0_14] : memref<16x128xf32, #tpu.memory_space<vmem>>, vector<16x128xf32>
    tpu.vector_store %arg5[%c0_13, %c0_14], %22 {strides = array<i32>} : memref<16x128xf32, #tpu.memory_space<vmem>>, vector<16x128xf32>,
    return
  }
  func.func @transform_0(%arg0: i32) -> (i32, i32) {
    %c0_i32 = arith.constant 0 : i32
    %c0_i32_0 = arith.constant 0 : i32
    return %arg0, %c0_i32 : i32, i32
  }
  func.func @transform_1(%arg0: i32) -> (i32, i32) {
    %c0_i32 = arith.constant 0 : i32
    %c0_i32_0 = arith.constant 0 : i32
    %c0_i32_1 = arith.constant 0 : i32
    return %c0_i32, %c0_i32_0 : i32, i32
  }
  func.func @transform_2(%arg0: i32) -> (i32, i32) {
    %c0_i32 = arith.constant 0 : i32
    %c0_i32_0 = arith.constant 0 : i32
    %c0_i32_1 = arith.constant 0 : i32
    return %c0_i32, %c0_i32_0 : i32, i32
  }
  func.func @transform_3(%arg0: i32) -> (i32, i32) {
    %c0_i32 = arith.constant 0 : i32
    %c0_i32_0 = arith.constant 0 : i32
    %c0_i32_1 = arith.constant 0 : i32
    return %c0_i32, %c0_i32_0 : i32, i32
  }
  func.func @transform_4(%arg0: i32) -> (i32, i32) {
    %c0_i32 = arith.constant 0 : i32
    %c0_i32_0 = arith.constant 0 : i32
    return %arg0, %c0_i32 : i32, i32
  }
}

</mosaic_0001>

<llo_original>
// kernel: fastreid_with_post.3
$region0: #{fastreid_with_post.3}
  #allocation0 [shape = 'u32[]', space=smem, size = 0x4, offset = 0x4, fixed_abs, tag = 'smem constant byte address 0x4 - core index']
  #allocation1 [shape = 'u32[72,128]{1,0:T(1,128)}', space=vmem, size = 0x9000, scoped, tag = 'internal scratch']
  %s0 = inlined_call_operand.vmem [shape: f32[16,768], index: 0, kind: input, shape index: {}]
  %s1 = inlined_call_operand.vmem [shape: f32[768,128], index: 1, kind: input, shape index: {}]
  %s2 = inlined_call_operand.vmem [shape: f32[1,128], index: 2, kind: input, shape index: {}]
  %s3 = inlined_call_operand.vmem [shape: f32[128,128], index: 3, kind: input, shape index: {}]
  %s4 = inlined_call_operand.vmem [shape: f32[16,128], index: 4, kind: output, shape index: {}]
  %s5 = sld [smem:[#allocation0]]
  $region26: #{fastreid_with_post.3} parent=0
    _
  %s7 = ssub.s32 1, %s5
  %s8 = scalar_select 0, %s7, %s5
  // Predicated region
  $region2: #{fastreid_with_post.3} parent=0 // pred_check
    _
  $region3: #{fastreid_with_post.3} parent=0 // pred_check_branch
    %10 = sbr.rel (0) target = $region5
  $region4: #{fastreid_with_post.3} parent=0 // pred_region
    _
  $region5: #{fastreid_with_post.3} parent=0 // pred_fallthru
    _
  // Predicated region
  $region6: #{fastreid_with_post.3} parent=0 // pred_check
    _
  $region7: #{fastreid_with_post.3} parent=0 // pred_check_branch
    %12 = sbr.rel (0) target = $region9
  $region8: #{fastreid_with_post.3} parent=0 // pred_region
    _
  $region9: #{fastreid_with_post.3} parent=0 // pred_fallthru
    _
  // Predicated region
  $region10: #{fastreid_with_post.3} parent=0 // pred_check
    _
  $region11: #{fastreid_with_post.3} parent=0 // pred_check_branch
    %14 = sbr.rel (0) target = $region13
  $region12: #{fastreid_with_post.3} parent=0 // pred_region
    _
  $region13: #{fastreid_with_post.3} parent=0 // pred_fallthru
    _
  // Predicated region
  $region14: #{fastreid_with_post.3} parent=0 // pred_check
    _
  $region15: #{fastreid_with_post.3} parent=0 // pred_check_branch
    %16 = sbr.rel (0) target = $region17
  $region16: #{fastreid_with_post.3} parent=0 // pred_region
    _
  $region17: #{fastreid_with_post.3} parent=0 // pred_fallthru
    _
  %v17 = vld [vmem:[%s0] sm:$0xff]
  %v18 = vld [vmem:[%s0 + $0x8] sm:$0xff]
  %v19 = vld [vmem:[%s0 + $0x10] sm:$0xff]
  %v20 = vld [vmem:[%s0 + $0x18] sm:$0xff]
  %v21 = vld [vmem:[%s0 + $0x20] sm:$0xff]
  %v22 = vld [vmem:[%s0 + $0x28] sm:$0xff]
  %v23 = vld [vmem:[%s0 + $0x30] sm:$0xff]
  %v24 = vld [vmem:[%s0 + $0x38] sm:$0xff]
  %v25 = vld [vmem:[%s0 + $0x40] sm:$0xff]
  %v26 = vld [vmem:[%s0 + $0x48] sm:$0xff]
  %v27 = vld [vmem:[%s0 + $0x50] sm:$0xff]
  %v28 = vld [vmem:[%s0 + $0x58] sm:$0xff]
  %v29 = vld [vmem:[%s1] sm:$0xff]
  %v30 = vld [vmem:[%s1 + $0x8] sm:$0xff]
  %v31 = vld [vmem:[%s1 + $0x10] sm:$0xff]
  %v32 = vld [vmem:[%s1 + $0x18] sm:$0xff]
  %v33 = vld [vmem:[%s1 + $0x20] sm:$0xff]
  %v34 = vld [vmem:[%s1 + $0x28] sm:$0xff]
  %v35 = vld [vmem:[%s1 + $0x30] sm:$0xff]
  %v36 = vld [vmem:[%s1 + $0x38] sm:$0xff]
  %v37 = vld [vmem:[%s1 + $0x40] sm:$0xff]
  %v38 = vld [vmem:[%s1 + $0x48] sm:$0xff]
  %v39 = vld [vmem:[%s1 + $0x50] sm:$0xff]
  %v40 = vld [vmem:[%s1 + $0x58] sm:$0xff]
  %v41 = vld [vmem:[%s1 + $0x60] sm:$0xff]
  %v42 = vld [vmem:[%s1 + $0x68] sm:$0xff]
  %v43 = vld [vmem:[%s1 + $0x70] sm:$0xff]
  %v44 = vld [vmem:[%s1 + $0x78] sm:$0xff]
  %v45 = vld [vmem:[%s1 + $0x80] sm:$0xff]
  %v46 = vld [vmem:[%s1 + $0x88] sm:$0xff]
  %v47 = vld [vmem:[%s1 + $0x90] sm:$0xff]
  %v48 = vld [vmem:[%s1 + $0x98] sm:$0xff]
  %v49 = vld [vmem:[%s1 + $0xa0] sm:$0xff]
  %v50 = vld [vmem:[%s1 + $0xa8] sm:$0xff]
  %v51 = vld [vmem:[%s1 + $0xb0] sm:$0xff]
  %v52 = vld [vmem:[%s1 + $0xb8] sm:$0xff]
  %v53 = vld [vmem:[%s1 + $0xc0] sm:$0xff]
  %v54 = vld [vmem:[%s1 + $0xc8] sm:$0xff]
  %v55 = vld [vmem:[%s1 + $0xd0] sm:$0xff]
  %v56 = vld [vmem:[%s1 + $0xd8] sm:$0xff]
  %v57 = vld [vmem:[%s1 + $0xe0] sm:$0xff]
  %v58 = vld [vmem:[%s1 + $0xe8] sm:$0xff]
  %v59 = vld [vmem:[%s1 + $0xf0] sm:$0xff]
  %v60 = vld [vmem:[%s1 + $0xf8] sm:$0xff]
  %v61 = vld [vmem:[%s1 + $0x100] sm:$0xff]
  %v62 = vld [vmem:[%s1 + $0x108] sm:$0xff]
  %v63 = vld [vmem:[%s1 + $0x110] sm:$0xff]
  %v64 = vld [vmem:[%s1 + $0x118] sm:$0xff]
  %v65 = vld [vmem:[%s1 + $0x120] sm:$0xff]
  %v66 = vld [vmem:[%s1 + $0x128] sm:$0xff]
  %v67 = vld [vmem:[%s1 + $0x130] sm:$0xff]
  %v68 = vld [vmem:[%s1 + $0x138] sm:$0xff]
  %v69 = vld [vmem:[%s1 + $0x140] sm:$0xff]
  %v70 = vld [vmem:[%s1 + $0x148] sm:$0xff]
  %v71 = vld [vmem:[%s1 + $0x150] sm:$0xff]
  %v72 = vld [vmem:[%s1 + $0x158] sm:$0xff]
  %v73 = vld [vmem:[%s1 + $0x160] sm:$0xff]
  %v74 = vld [vmem:[%s1 + $0x168] sm:$0xff]
  %v75 = vld [vmem:[%s1 + $0x170] sm:$0xff]
  %v76 = vld [vmem:[%s1 + $0x178] sm:$0xff]
  %v77 = vld [vmem:[%s1 + $0x180] sm:$0xff]
  %v78 = vld [vmem:[%s1 + $0x188] sm:$0xff]
  %v79 = vld [vmem:[%s1 + $0x190] sm:$0xff]
  %v80 = vld [vmem:[%s1 + $0x198] sm:$0xff]
  %v81 = vld [vmem:[%s1 + $0x1a0] sm:$0xff]
  %v82 = vld [vmem:[%s1 + $0x1a8] sm:$0xff]
  %v83 = vld [vmem:[%s1 + $0x1b0] sm:$0xff]
  %v84 = vld [vmem:[%s1 + $0x1b8] sm:$0xff]
  %v85 = vld [vmem:[%s1 + $0x1c0] sm:$0xff]
  %v86 = vld [vmem:[%s1 + $0x1c8] sm:$0xff]
  %v87 = vld [vmem:[%s1 + $0x1d0] sm:$0xff]
  %v88 = vld [vmem:[%s1 + $0x1d8] sm:$0xff]
  %v89 = vld [vmem:[%s1 + $0x1e0] sm:$0xff]
  %v90 = vld [vmem:[%s1 + $0x1e8] sm:$0xff]
  %v91 = vld [vmem:[%s1 + $0x1f0] sm:$0xff]
  %v92 = vld [vmem:[%s1 + $0x1f8] sm:$0xff]
  %v93 = vld [vmem:[%s1 + $0x200] sm:$0xff]
  %v94 = vld [vmem:[%s1 + $0x208] sm:$0xff]
  %v95 = vld [vmem:[%s1 + $0x210] sm:$0xff]
  %v96 = vld [vmem:[%s1 + $0x218] sm:$0xff]
  %v97 = vld [vmem:[%s1 + $0x220] sm:$0xff]
  %v98 = vld [vmem:[%s1 + $0x228] sm:$0xff]
  %v99 = vld [vmem:[%s1 + $0x230] sm:$0xff]
  %v100 = vld [vmem:[%s1 + $0x238] sm:$0xff]
  %v101 = vld [vmem:[%s1 + $0x240] sm:$0xff]
  %v102 = vld [vmem:[%s1 + $0x248] sm:$0xff]
  %v103 = vld [vmem:[%s1 + $0x250] sm:$0xff]
  %v104 = vld [vmem:[%s1 + $0x258] sm:$0xff]
  %v105 = vld [vmem:[%s1 + $0x260] sm:$0xff]
  %v106 = vld [vmem:[%s1 + $0x268] sm:$0xff]
  %v107 = vld [vmem:[%s1 + $0x270] sm:$0xff]
  %v108 = vld [vmem:[%s1 + $0x278] sm:$0xff]
  %v109 = vld [vmem:[%s1 + $0x280] sm:$0xff]
  %v110 = vld [vmem:[%s1 + $0x288] sm:$0xff]
  %v111 = vld [vmem:[%s1 + $0x290] sm:$0xff]
  %v112 = vld [vmem:[%s1 + $0x298] sm:$0xff]
  %v113 = vld [vmem:[%s1 + $0x2a0] sm:$0xff]
  %v114 = vld [vmem:[%s1 + $0x2a8] sm:$0xff]
  %v115 = vld [vmem:[%s1 + $0x2b0] sm:$0xff]
  %v116 = vld [vmem:[%s1 + $0x2b8] sm:$0xff]
  %v117 = vld [vmem:[%s1 + $0x2c0] sm:$0xff]
  %v118 = vld [vmem:[%s1 + $0x2c8] sm:$0xff]
  %v119 = vld [vmem:[%s1 + $0x2d0] sm:$0xff]
  %v120 = vld [vmem:[%s1 + $0x2d8] sm:$0xff]
  %v121 = vld [vmem:[%s1 + $0x2e0] sm:$0xff]
  %v122 = vld [vmem:[%s1 + $0x2e8] sm:$0xff]
  %v123 = vld [vmem:[%s1 + $0x2f0] sm:$0xff]
  %v124 = vld [vmem:[%s1 + $0x2f8] sm:$0xff]
  %v125 = vld [vmem:[%s2] sm:$0x1]
  %v127 = vperm.slane %v125, 0
  %129 = vmatpush.msra.mxu0 %v44
  %130 = vmatpush.msra.mxu0 %v43
  %131 = vmatpush.msra.mxu0 %v42
  %132 = vmatpush.msra.mxu0 %v41
  %133 = vmatpush.msra.mxu0 %v40
  %134 = vmatpush.msra.mxu0 %v39
  %135 = vmatpush.msra.mxu0 %v38
  %136 = vmatpush.msra.mxu0 %v37
  %137 = vmatpush.msra.mxu0 %v36
  %138 = vmatpush.msra.mxu0 %v35
  %139 = vmatpush.msra.mxu0 %v34
  %140 = vmatpush.msra.mxu0 %v33
  %141 = vmatpush.msra.mxu0 %v32
  %142 = vmatpush.msra.mxu0 %v31
  %143 = vmatpush.msra.mxu0 %v30
  %144 = vmatpush.msra.mxu0 %v29
  %145 = vmatmul.f32.gmra.mxu0 %v17
  %v146 = vpop.f32.mrf.mxu0
  %v147 = vadd.f32 %v127, %v146
  %148 = vmatmul.f32.gmra.mxu0 %v23
  %v149 = vpop.f32.mrf.mxu0
  %v150 = vadd.f32 %v127, %v149
  %151 = vdwg.mxu0
  %152 = vmatpush.msra.mxu0 %v60
  %153 = vmatpush.msra.mxu0 %v59
  %154 = vmatpush.msra.mxu0 %v58
  %155 = vmatpush.msra.mxu0 %v57
  %156 = vmatpush.msra.mxu0 %v56
  %157 = vmatpush.msra.mxu0 %v55
  %158 = vmatpush.msra.mxu0 %v54
  %159 = vmatpush.msra.mxu0 %v53
  %160 = vmatpush.msra.mxu0 %v52
  %161 = vmatpush.msra.mxu0 %v51
  %162 = vmatpush.msra.mxu0 %v50
  %163 = vmatpush.msra.mxu0 %v49
  %164 = vmatpush.msra.mxu0 %v48
  %165 = vmatpush.msra.mxu0 %v47
  %166 = vmatpush.msra.mxu0 %v46
  %167 = vmatpush.msra.mxu0 %v45
  %168 = vmatmul.f32.gmra.mxu0 %v18
  %v169 = vpop.f32.mrf.mxu0
  %v170 = vadd.f32 %v147, %v169
  %171 = vmatmul.f32.gmra.mxu0 %v24
  %v172 = vpop.f32.mrf.mxu0
  %v173 = vadd.f32 %v150, %v172
  %174 = vdwg.mxu0
  %175 = vmatpush.msra.mxu0 %v76
  %176 = vmatpush.msra.mxu0 %v75
  %177 = vmatpush.msra.mxu0 %v74
  %178 = vmatpush.msra.mxu0 %v73
  %179 = vmatpush.msra.mxu0 %v72
  %180 = vmatpush.msra.mxu0 %v71
  %181 = vmatpush.msra.mxu0 %v70
  %182 = vmatpush.msra.mxu0 %v69
  %183 = vmatpush.msra.mxu0 %v68
  %184 = vmatpush.msra.mxu0 %v67
  %185 = vmatpush.msra.mxu0 %v66
  %186 = vmatpush.msra.mxu0 %v65
  %187 = vmatpush.msra.mxu0 %v64
  %188 = vmatpush.msra.mxu0 %v63
  %189 = vmatpush.msra.mxu0 %v62
  %190 = vmatpush.msra.mxu0 %v61
  %191 = vmatmul.f32.gmra.mxu0 %v19
  %v192 = vpop.f32.mrf.mxu0
  %v193 = vadd.f32 %v170, %v192
  %194 = vmatmul.f32.gmra.mxu0 %v25
  %v195 = vpop.f32.mrf.mxu0
  %v196 = vadd.f32 %v173, %v195
  %197 = vdwg.mxu0
  %198 = vmatpush.msra.mxu0 %v92
  %199 = vmatpush.msra.mxu0 %v91
  %200 = vmatpush.msra.mxu0 %v90
  %201 = vmatpush.msra.mxu0 %v89
  %202 = vmatpush.msra.mxu0 %v88
  %203 = vmatpush.msra.mxu0 %v87
  %204 = vmatpush.msra.mxu0 %v86
  %205 = vmatpush.msra.mxu0 %v85
  %206 = vmatpush.msra.mxu0 %v84
  %207 = vmatpush.msra.mxu0 %v83
  %208 = vmatpush.msra.mxu0 %v82
  %209 = vmatpush.msra.mxu0 %v81
  %210 = vmatpush.msra.mxu0 %v80
  %211 = vmatpush.msra.mxu0 %v79
  %212 = vmatpush.msra.mxu0 %v78
  %213 = vmatpush.msra.mxu0 %v77
  %214 = vmatmul.f32.gmra.mxu0 %v20
  %v215 = vpop.f32.mrf.mxu0
  %v216 = vadd.f32 %v193, %v215
  %217 = vmatmul.f32.gmra.mxu0 %v26
  %v218 = vpop.f32.mrf.mxu0
  %v219 = vadd.f32 %v196, %v218
  %220 = vdwg.mxu0
  %221 = vmatpush.msra.mxu0 %v108
  %222 = vmatpush.msra.mxu0 %v107
  %223 = vmatpush.msra.mxu0 %v106
  %224 = vmatpush.msra.mxu0 %v105
  %225 = vmatpush.msra.mxu0 %v104
  %226 = vmatpush.msra.mxu0 %v103
  %227 = vmatpush.msra.mxu0 %v102
  %228 = vmatpush.msra.mxu0 %v101
  %229 = vmatpush.msra.mxu0 %v100
  %230 = vmatpush.msra.mxu0 %v99
  %231 = vmatpush.msra.mxu0 %v98
  %232 = vmatpush.msra.mxu0 %v97
  %233 = vmatpush.msra.mxu0 %v96
  %234 = vmatpush.msra.mxu0 %v95
  %235 = vmatpush.msra.mxu0 %v94
  %236 = vmatpush.msra.mxu0 %v93
  %237 = vmatmul.f32.gmra.mxu0 %v21
  %v238 = vpop.f32.mrf.mxu0
  %v239 = vadd.f32 %v216, %v238
  %240 = vmatmul.f32.gmra.mxu0 %v27
  %v241 = vpop.f32.mrf.mxu0
  %v242 = vadd.f32 %v219, %v241
  %243 = vdwg.mxu0
  %244 = vmatpush.msra.mxu0 %v124
  %245 = vmatpush.msra.mxu0 %v123
  %246 = vmatpush.msra.mxu0 %v122
  %247 = vmatpush.msra.mxu0 %v121
  %248 = vmatpush.msra.mxu0 %v120
  %249 = vmatpush.msra.mxu0 %v119
  %250 = vmatpush.msra.mxu0 %v118
  %251 = vmatpush.msra.mxu0 %v117
  %252 = vmatpush.msra.mxu0 %v116
  %253 = vmatpush.msra.mxu0 %v115
  %254 = vmatpush.msra.mxu0 %v114
  %255 = vmatpush.msra.mxu0 %v113
  %256 = vmatpush.msra.mxu0 %v112
  %257 = vmatpush.msra.mxu0 %v111
  %258 = vmatpush.msra.mxu0 %v110
  %259 = vmatpush.msra.mxu0 %v109
  %260 = vmatmul.f32.gmra.mxu0 %v22
  %v261 = vpop.f32.mrf.mxu0
  %v262 = vadd.f32 %v239, %v261
  %263 = vmatmul.f32.gmra.mxu0 %v28
  %v264 = vpop.f32.mrf.mxu0
  %v265 = vadd.f32 %v242, %v264
  %266 = vdwg.mxu0
  %v267 = vand.u32 2147483647, %v262
  %v268 = vand.u32 2147483647, %v265
  %vm269 = vcmp.eq.f32.partialorder %v267, inf
  %vm270 = vcmp.eq.f32.partialorder %v268, inf
  %v271 = vsel %vm269, 1.0, %v262
  %v272 = vsel %vm270, 1.0, %v265
  %v273 = vmul.f32 %v271, %v271
  %v274 = vmul.f32 %v272, %v272
  %275 = vadd.xlane.f32.xlu0 %v273
  %v276 = vpop.xlane.xlu0 %275
  %277 = vadd.xlane.f32.xlu0 %v274
  %v278 = vpop.xlane.xlu0 %277
  %v279 = vmax.f32 %v276, 1e-24
  %v280 = vmax.f32 %v278, 1e-24
  %v281 = vrsqrt.pop %v279
  %v282 = vmul.f32 %v281, %v279
  %v283 = vmul.f32 %v282, %v281
  %v284 = vmul.f32 0.5, %v283
  %v285 = vsub.f32 1.5, %v284
  %v286 = vmul.f32 %v281, %v285
  %vm287 = vweird.f32 %v279
  %vm288 = vweird.f32 %v281
  %vm289 = vmor %vm287, %vm288
  %v290 = vsel %vm289, %v281, %v286
  %v291 = vrsqrt.pop %v280
  %v292 = vmul.f32 %v291, %v280
  %v293 = vmul.f32 %v292, %v291
  %v294 = vmul.f32 0.5, %v293
  %v295 = vsub.f32 1.5, %v294
  %v296 = vmul.f32 %v291, %v295
  %vm297 = vweird.f32 %v280
  %vm298 = vweird.f32 %v291
  %vm299 = vmor %vm297, %vm298
  %v300 = vsel %vm299, %v291, %v296
  %v301 = vmul.f32 %v271, %v290
  %v302 = vmul.f32 %v272, %v300
  %v303 = vld [vmem:[%s3] sm:$0xff]
  %v304 = vld [vmem:[%s3 + $0x8] sm:$0xff]
  %v305 = vld [vmem:[%s3 + $0x10] sm:$0xff]
  %v306 = vld [vmem:[%s3 + $0x18] sm:$0xff]
  %v307 = vld [vmem:[%s3 + $0x20] sm:$0xff]
  %v308 = vld [vmem:[%s3 + $0x28] sm:$0xff]
  %v309 = vld [vmem:[%s3 + $0x30] sm:$0xff]
  %v310 = vld [vmem:[%s3 + $0x38] sm:$0xff]
  %v311 = vld [vmem:[%s3 + $0x40] sm:$0xff]
  %v312 = vld [vmem:[%s3 + $0x48] sm:$0xff]
  %v313 = vld [vmem:[%s3 + $0x50] sm:$0xff]
  %v314 = vld [vmem:[%s3 + $0x58] sm:$0xff]
  %v315 = vld [vmem:[%s3 + $0x60] sm:$0xff]
  %v316 = vld [vmem:[%s3 + $0x68] sm:$0xff]
  %v317 = vld [vmem:[%s3 + $0x70] sm:$0xff]
  %v318 = vld [vmem:[%s3 + $0x78] sm:$0xff]
  %319 = vmatpush.msra.mxu0 %v318
  %320 = vmatpush.msra.mxu0 %v317
  %321 = vmatpush.msra.mxu0 %v316
  %322 = vmatpush.msra.mxu0 %v315
  %323 = vmatpush.msra.mxu0 %v314
  %324 = vmatpush.msra.mxu0 %v313
  %325 = vmatpush.msra.mxu0 %v312
  %326 = vmatpush.msra.mxu0 %v311
  %327 = vmatpush.msra.mxu0 %v310
  %328 = vmatpush.msra.mxu0 %v309
  %329 = vmatpush.msra.mxu0 %v308
  %330 = vmatpush.msra.mxu0 %v307
  %331 = vmatpush.msra.mxu0 %v306
  %332 = vmatpush.msra.mxu0 %v305
  %333 = vmatpush.msra.mxu0 %v304
  %334 = vmatpush.msra.mxu0 %v303
  %335 = vmatmul.f32.gmra.mxu0 %v301
  %v336 = vpop.f32.mrf.mxu0
  %v337 = vadd.f32 0.0, %v336
  %338 = vmatmul.f32.gmra.mxu0 %v302
  %v339 = vpop.f32.mrf.mxu0
  %v340 = vadd.f32 0.0, %v339
  %341 = vdwg.mxu0
  %v342 = vmax.f32 %v337, 0.0
  %v343 = vmax.f32 %v340, 0.0
  %344 = vst [vmem:[%s4] sm:$0xff] %v342
  %345 = vst [vmem:[%s4 + $0x8] sm:$0xff] %v343
  // Predicated region
  $region18: #{fastreid_with_post.3} parent=0 // pred_check
    _
  $region19: #{fastreid_with_post.3} parent=0 // pred_check_branch
    %347 = sbr.rel (0) target = $region21
  $region20: #{fastreid_with_post.3} parent=0 // pred_region
    _
  $region21: #{fastreid_with_post.3} parent=0 // pred_fallthru
    _
  // Predicated region
  $region22: #{fastreid_with_post.3} parent=0 // pred_check
    _
  $region23: #{fastreid_with_post.3} parent=0 // pred_check_branch
    %349 = sbr.rel (0) target = $region25
  $region24: #{fastreid_with_post.3} parent=0 // pred_region
    _
  $region25: #{fastreid_with_post.3} parent=0 // pred_fallthru
    _

// kernel: fastreid_with_post.2
$region0: #{fastreid_with_post.2}
  #allocation0 [shape = 'u32[]', space=smem, size = 0x4, offset = 0x4, fixed_abs, tag = 'smem constant byte address 0x4 - core index']
  #allocation1 [shape = 'u32[72,128]{1,0:T(1,128)}', space=vmem, size = 0x9000, scoped, tag = 'internal scratch']
  %s0 = inlined_call_operand.vmem [shape: f32[128,768], index: 0, kind: input, shape index: {}]
  %s1 = inlined_call_operand.vmem [shape: f32[768,128], index: 1, kind: input, shape index: {}]
  %s2 = inlined_call_operand.vmem [shape: f32[1,128], index: 2, kind: input, shape index: {}]
  %s3 = inlined_call_operand.vmem [shape: f32[128,128], index: 3, kind: output, shape index: {}]
  %s4 = sld [smem:[#allocation0]]
  $region22: #{fastreid_with_post.2} parent=0
    _
  %s6 = ssub.s32 1, %s4
  %s7 = scalar_select 0, %s6, %s4
  // Predicated region
  $region2: #{fastreid_with_post.2} parent=0 // pred_check
    _
  $region3: #{fastreid_with_post.2} parent=0 // pred_check_branch
    %9 = sbr.rel (0) target = $region5
  $region4: #{fastreid_with_post.2} parent=0 // pred_region
    _
  $region5: #{fastreid_with_post.2} parent=0 // pred_fallthru
    _
  // Predicated region
  $region6: #{fastreid_with_post.2} parent=0 // pred_check
    _
  $region7: #{fastreid_with_post.2} parent=0 // pred_check_branch
    %11 = sbr.rel (0) target = $region9
  $region8: #{fastreid_with_post.2} parent=0 // pred_region
    _
  $region9: #{fastreid_with_post.2} parent=0 // pred_fallthru
    _
  // Predicated region
  $region10: #{fastreid_with_post.2} parent=0 // pred_check
    _
  $region11: #{fastreid_with_post.2} parent=0 // pred_check_branch
    %13 = sbr.rel (0) target = $region13
  $region12: #{fastreid_with_post.2} parent=0 // pred_region
    _
  $region13: #{fastreid_with_post.2} parent=0 // pred_fallthru
    _
  %v14 = vld [vmem:[%s0] sm:$0xff]
  %v15 = vld [vmem:[%s0 + $0x8] sm:$0xff]
  %v16 = vld [vmem:[%s0 + $0x10] sm:$0xff]
  %v17 = vld [vmem:[%s0 + $0x18] sm:$0xff]
  %v18 = vld [vmem:[%s0 + $0x20] sm:$0xff]
  %v19 = vld [vmem:[%s0 + $0x28] sm:$0xff]
  %v20 = vld [vmem:[%s0 + $0x30] sm:$0xff]
  %v21 = vld [vmem:[%s0 + $0x38] sm:$0xff]
  %v22 = vld [vmem:[%s0 + $0x40] sm:$0xff]
  %v23 = vld [vmem:[%s0 + $0x48] sm:$0xff]
  %v24 = vld [vmem:[%s0 + $0x50] sm:$0xff]
  %v25 = vld [vmem:[%s0 + $0x58] sm:$0xff]
  %v26 = vld [vmem:[%s0 + $0x60] sm:$0xff]
  %v27 = vld [vmem:[%s0 + $0x68] sm:$0xff]
  %v28 = vld [vmem:[%s0 + $0x70] sm:$0xff]
  %v29 = vld [vmem:[%s0 + $0x78] sm:$0xff]
  %v30 = vld [vmem:[%s0 + $0x80] sm:$0xff]
  %v31 = vld [vmem:[%s0 + $0x88] sm:$0xff]
  %v32 = vld [vmem:[%s0 + $0x90] sm:$0xff]
  %v33 = vld [vmem:[%s0 + $0x98] sm:$0xff]
  %v34 = vld [vmem:[%s0 + $0xa0] sm:$0xff]
  %v35 = vld [vmem:[%s0 + $0xa8] sm:$0xff]
  %v36 = vld [vmem:[%s0 + $0xb0] sm:$0xff]
  %v37 = vld [vmem:[%s0 + $0xb8] sm:$0xff]
  %v38 = vld [vmem:[%s0 + $0xc0] sm:$0xff]
  %v39 = vld [vmem:[%s0 + $0xc8] sm:$0xff]
  %v40 = vld [vmem:[%s0 + $0xd0] sm:$0xff]
  %v41 = vld [vmem:[%s0 + $0xd8] sm:$0xff]
  %v42 = vld [vmem:[%s0 + $0xe0] sm:$0xff]
  %v43 = vld [vmem:[%s0 + $0xe8] sm:$0xff]
  %v44 = vld [vmem:[%s0 + $0xf0] sm:$0xff]
  %v45 = vld [vmem:[%s0 + $0xf8] sm:$0xff]
  %v46 = vld [vmem:[%s0 + $0x100] sm:$0xff]
  %v47 = vld [vmem:[%s0 + $0x108] sm:$0xff]
  %v48 = vld [vmem:[%s0 + $0x110] sm:$0xff]
  %v49 = vld [vmem:[%s0 + $0x118] sm:$0xff]
  %v50 = vld [vmem:[%s0 + $0x120] sm:$0xff]
  %v51 = vld [vmem:[%s0 + $0x128] sm:$0xff]
  %v52 = vld [vmem:[%s0 + $0x130] sm:$0xff]
  %v53 = vld [vmem:[%s0 + $0x138] sm:$0xff]
  %v54 = vld [vmem:[%s0 + $0x140] sm:$0xff]
  %v55 = vld [vmem:[%s0 + $0x148] sm:$0xff]
  %v56 = vld [vmem:[%s0 + $0x150] sm:$0xff]
  %v57 = vld [vmem:[%s0 + $0x158] sm:$0xff]
  %v58 = vld [vmem:[%s0 + $0x160] sm:$0xff]
  %v59 = vld [vmem:[%s0 + $0x168] sm:$0xff]
  %v60 = vld [vmem:[%s0 + $0x170] sm:$0xff]
  %v61 = vld [vmem:[%s0 + $0x178] sm:$0xff]
  %v62 = vld [vmem:[%s0 + $0x180] sm:$0xff]
  %v63 = vld [vmem:[%s0 + $0x188] sm:$0xff]
  %v64 = vld [vmem:[%s0 + $0x190] sm:$0xff]
  %v65 = vld [vmem:[%s0 + $0x198] sm:$0xff]
  %v66 = vld [vmem:[%s0 + $0x1a0] sm:$0xff]
  %v67 = vld [vmem:[%s0 + $0x1a8] sm:$0xff]
  %v68 = vld [vmem:[%s0 + $0x1b0] sm:$0xff]
  %v69 = vld [vmem:[%s0 + $0x1b8] sm:$0xff]
  %v70 = vld [vmem:[%s0 + $0x1c0] sm:$0xff]
  %v71 = vld [vmem:[%s0 + $0x1c8] sm:$0xff]
  %v72 = vld [vmem:[%s0 + $0x1d0] sm:$0xff]
  %v73 = vld [vmem:[%s0 + $0x1d8] sm:$0xff]
  %v74 = vld [vmem:[%s0 + $0x1e0] sm:$0xff]
  %v75 = vld [vmem:[%s0 + $0x1e8] sm:$0xff]
  %v76 = vld [vmem:[%s0 + $0x1f0] sm:$0xff]
  %v77 = vld [vmem:[%s0 + $0x1f8] sm:$0xff]
  %v78 = vld [vmem:[%s0 + $0x200] sm:$0xff]
  %v79 = vld [vmem:[%s0 + $0x208] sm:$0xff]
  %v80 = vld [vmem:[%s0 + $0x210] sm:$0xff]
  %v81 = vld [vmem:[%s0 + $0x218] sm:$0xff]
  %v82 = vld [vmem:[%s0 + $0x220] sm:$0xff]
  %v83 = vld [vmem:[%s0 + $0x228] sm:$0xff]
  %v84 = vld [vmem:[%s0 + $0x230] sm:$0xff]
  %v85 = vld [vmem:[%s0 + $0x238] sm:$0xff]
  %v86 = vld [vmem:[%s0 + $0x240] sm:$0xff]
  %v87 = vld [vmem:[%s0 + $0x248] sm:$0xff]
  %v88 = vld [vmem:[%s0 + $0x250] sm:$0xff]
  %v89 = vld [vmem:[%s0 + $0x258] sm:$0xff]
  %v90 = vld [vmem:[%s0 + $0x260] sm:$0xff]
  %v91 = vld [vmem:[%s0 + $0x268] sm:$0xff]
  %v92 = vld [vmem:[%s0 + $0x270] sm:$0xff]
  %v93 = vld [vmem:[%s0 + $0x278] sm:$0xff]
  %v94 = vld [vmem:[%s0 + $0x280] sm:$0xff]
  %v95 = vld [vmem:[%s0 + $0x288] sm:$0xff]
  %v96 = vld [vmem:[%s0 + $0x290] sm:$0xff]
  %v97 = vld [vmem:[%s0 + $0x298] sm:$0xff]
  %v98 = vld [vmem:[%s0 + $0x2a0] sm:$0xff]
  %v99 = vld [vmem:[%s0 + $0x2a8] sm:$0xff]
  %v100 = vld [vmem:[%s0 + $0x2b0] sm:$0xff]
  %v101 = vld [vmem:[%s0 + $0x2b8] sm:$0xff]
  %v102 = vld [vmem:[%s0 + $0x2c0] sm:$0xff]
  %v103 = vld [vmem:[%s0 + $0x2c8] sm:$0xff]
  %v104 = vld [vmem:[%s0 + $0x2d0] sm:$0xff]
  %v105 = vld [vmem:[%s0 + $0x2d8] sm:$0xff]
  %v106 = vld [vmem:[%s0 + $0x2e0] sm:$0xff]
  %v107 = vld [vmem:[%s0 + $0x2e8] sm:$0xff]
  %v108 = vld [vmem:[%s0 + $0x2f0] sm:$0xff]
  %v109 = vld [vmem:[%s0 + $0x2f8] sm:$0xff]
  %v110 = vld [vmem:[%s1] sm:$0xff]
  %v111 = vld [vmem:[%s1 + $0x8] sm:$0xff]
  %v112 = vld [vmem:[%s1 + $0x10] sm:$0xff]
  %v113 = vld [vmem:[%s1 + $0x18] sm:$0xff]
  %v114 = vld [vmem:[%s1 + $0x20] sm:$0xff]
  %v115 = vld [vmem:[%s1 + $0x28] sm:$0xff]
  %v116 = vld [vmem:[%s1 + $0x30] sm:$0xff]
  %v117 = vld [vmem:[%s1 + $0x38] sm:$0xff]
  %v118 = vld [vmem:[%s1 + $0x40] sm:$0xff]
  %v119 = vld [vmem:[%s1 + $0x48] sm:$0xff]
  %v120 = vld [vmem:[%s1 + $0x50] sm:$0xff]
  %v121 = vld [vmem:[%s1 + $0x58] sm:$0xff]
  %v122 = vld [vmem:[%s1 + $0x60] sm:$0xff]
  %v123 = vld [vmem:[%s1 + $0x68] sm:$0xff]
  %v124 = vld [vmem:[%s1 + $0x70] sm:$0xff]
  %v125 = vld [vmem:[%s1 + $0x78] sm:$0xff]
  %v126 = vld [vmem:[%s1 + $0x80] sm:$0xff]
  %v127 = vld [vmem:[%s1 + $0x88] sm:$0xff]
  %v128 = vld [vmem:[%s1 + $0x90] sm:$0xff]
  %v129 = vld [vmem:[%s1 + $0x98] sm:$0xff]
  %v130 = vld [vmem:[%s1 + $0xa0] sm:$0xff]
  %v131 = vld [vmem:[%s1 + $0xa8] sm:$0xff]
  %v132 = vld [vmem:[%s1 + $0xb0] sm:$0xff]
  %v133 = vld [vmem:[%s1 + $0xb8] sm:$0xff]
  %v134 = vld [vmem:[%s1 + $0xc0] sm:$0xff]
  %v135 = vld [vmem:[%s1 + $0xc8] sm:$0xff]
  %v136 = vld [vmem:[%s1 + $0xd0] sm:$0xff]
  %v137 = vld [vmem:[%s1 + $0xd8] sm:$0xff]
  %v138 = vld [vmem:[%s1 + $0xe0] sm:$0xff]
  %v139 = vld [vmem:[%s1 + $0xe8] sm:$0xff]
  %v140 = vld [vmem:[%s1 + $0xf0] sm:$0xff]
  %v141 = vld [vmem:[%s1 + $0xf8] sm:$0xff]
  %v142 = vld [vmem:[%s1 + $0x100] sm:$0xff]
  %v143 = vld [vmem:[%s1 + $0x108] sm:$0xff]
  %v144 = vld [vmem:[%s1 + $0x110] sm:$0xff]
  %v145 = vld [vmem:[%s1 + $0x118] sm:$0xff]
  %v146 = vld [vmem:[%s1 + $0x120] sm:$0xff]
  %v147 = vld [vmem:[%s1 + $0x128] sm:$0xff]
  %v148 = vld [vmem:[%s1 + $0x130] sm:$0xff]
  %v149 = vld [vmem:[%s1 + $0x138] sm:$0xff]
  %v150 = vld [vmem:[%s1 + $0x140] sm:$0xff]
  %v151 = vld [vmem:[%s1 + $0x148] sm:$0xff]
  %v152 = vld [vmem:[%s1 + $0x150] sm:$0xff]
  %v153 = vld [vmem:[%s1 + $0x158] sm:$0xff]
  %v154 = vld [vmem:[%s1 + $0x160] sm:$0xff]
  %v155 = vld [vmem:[%s1 + $0x168] sm:$0xff]
  %v156 = vld [vmem:[%s1 + $0x170] sm:$0xff]
  %v157 = vld [vmem:[%s1 + $0x178] sm:$0xff]
  %v158 = vld [vmem:[%s1 + $0x180] sm:$0xff]
  %v159 = vld [vmem:[%s1 + $0x188] sm:$0xff]
  %v160 = vld [vmem:[%s1 + $0x190] sm:$0xff]
  %v161 = vld [vmem:[%s1 + $0x198] sm:$0xff]
  %v162 = vld [vmem:[%s1 + $0x1a0] sm:$0xff]
  %v163 = vld [vmem:[%s1 + $0x1a8] sm:$0xff]
  %v164 = vld [vmem:[%s1 + $0x1b0] sm:$0xff]
  %v165 = vld [vmem:[%s1 + $0x1b8] sm:$0xff]
  %v166 = vld [vmem:[%s1 + $0x1c0] sm:$0xff]
  %v167 = vld [vmem:[%s1 + $0x1c8] sm:$0xff]
  %v168 = vld [vmem:[%s1 + $0x1d0] sm:$0xff]
  %v169 = vld [vmem:[%s1 + $0x1d8] sm:$0xff]
  %v170 = vld [vmem:[%s1 + $0x1e0] sm:$0xff]
  %v171 = vld [vmem:[%s1 + $0x1e8] sm:$0xff]
  %v172 = vld [vmem:[%s1 + $0x1f0] sm:$0xff]
  %v173 = vld [vmem:[%s1 + $0x1f8] sm:$0xff]
  %v174 = vld [vmem:[%s1 + $0x200] sm:$0xff]
  %v175 = vld [vmem:[%s1 + $0x208] sm:$0xff]
  %v176 = vld [vmem:[%s1 + $0x210] sm:$0xff]
  %v177 = vld [vmem:[%s1 + $0x218] sm:$0xff]
  %v178 = vld [vmem:[%s1 + $0x220] sm:$0xff]
  %v179 = vld [vmem:[%s1 + $0x228] sm:$0xff]
  %v180 = vld [vmem:[%s1 + $0x230] sm:$0xff]
  %v181 = vld [vmem:[%s1 + $0x238] sm:$0xff]
  %v182 = vld [vmem:[%s1 + $0x240] sm:$0xff]
  %v183 = vld [vmem:[%s1 + $0x248] sm:$0xff]
  %v184 = vld [vmem:[%s1 + $0x250] sm:$0xff]
  %v185 = vld [vmem:[%s1 + $0x258] sm:$0xff]
  %v186 = vld [vmem:[%s1 + $0x260] sm:$0xff]
  %v187 = vld [vmem:[%s1 + $0x268] sm:$0xff]
  %v188 = vld [vmem:[%s1 + $0x270] sm:$0xff]
  %v189 = vld [vmem:[%s1 + $0x278] sm:$0xff]
  %v190 = vld [vmem:[%s1 + $0x280] sm:$0xff]
  %v191 = vld [vmem:[%s1 + $0x288] sm:$0xff]
  %v192 = vld [vmem:[%s1 + $0x290] sm:$0xff]
  %v193 = vld [vmem:[%s1 + $0x298] sm:$0xff]
  %v194 = vld [vmem:[%s1 + $0x2a0] sm:$0xff]
  %v195 = vld [vmem:[%s1 + $0x2a8] sm:$0xff]
  %v196 = vld [vmem:[%s1 + $0x2b0] sm:$0xff]
  %v197 = vld [vmem:[%s1 + $0x2b8] sm:$0xff]
  %v198 = vld [vmem:[%s1 + $0x2c0] sm:$0xff]
  %v199 = vld [vmem:[%s1 + $0x2c8] sm:$0xff]
  %v200 = vld [vmem:[%s1 + $0x2d0] sm:$0xff]
  %v201 = vld [vmem:[%s1 + $0x2d8] sm:$0xff]
  %v202 = vld [vmem:[%s1 + $0x2e0] sm:$0xff]
  %v203 = vld [vmem:[%s1 + $0x2e8] sm:$0xff]
  %v204 = vld [vmem:[%s1 + $0x2f0] sm:$0xff]
  %v205 = vld [vmem:[%s1 + $0x2f8] sm:$0xff]
  %v206 = vld [vmem:[%s2] sm:$0x1]
  %v208 = vperm.slane %v206, 0
  %210 = vmatpush.msra.mxu0 %v125
  %211 = vmatpush.msra.mxu0 %v124
  %212 = vmatpush.msra.mxu0 %v123
  %213 = vmatpush.msra.mxu0 %v122
  %214 = vmatpush.msra.mxu0 %v121
  %215 = vmatpush.msra.mxu0 %v120
  %216 = vmatpush.msra.mxu0 %v119
  %217 = vmatpush.msra.mxu0 %v118
  %218 = vmatpush.msra.mxu0 %v117
  %219 = vmatpush.msra.mxu0 %v116
  %220 = vmatpush.msra.mxu0 %v115
  %221 = vmatpush.msra.mxu0 %v114
  %222 = vmatpush.msra.mxu0 %v113
  %223 = vmatpush.msra.mxu0 %v112
  %224 = vmatpush.msra.mxu0 %v111
  %225 = vmatpush.msra.mxu0 %v110
  %226 = vmatmul.f32.gmra.mxu0 %v14
  %v227 = vpop.f32.mrf.mxu0
  %v228 = vadd.f32 %v208, %v227
  %229 = vmatmul.f32.gmra.mxu0 %v20
  %v230 = vpop.f32.mrf.mxu0
  %v231 = vadd.f32 %v208, %v230
  %232 = vmatmul.f32.gmra.mxu0 %v26
  %v233 = vpop.f32.mrf.mxu0
  %v234 = vadd.f32 %v208, %v233
  %235 = vmatmul.f32.gmra.mxu0 %v32
  %v236 = vpop.f32.mrf.mxu0
  %v237 = vadd.f32 %v208, %v236
  %238 = vmatmul.f32.gmra.mxu0 %v38
  %v239 = vpop.f32.mrf.mxu0
  %v240 = vadd.f32 %v208, %v239
  %241 = vmatmul.f32.gmra.mxu0 %v44
  %v242 = vpop.f32.mrf.mxu0
  %v243 = vadd.f32 %v208, %v242
  %244 = vmatmul.f32.gmra.mxu0 %v50
  %v245 = vpop.f32.mrf.mxu0
  %v246 = vadd.f32 %v208, %v245
  %247 = vmatmul.f32.gmra.mxu0 %v56
  %v248 = vpop.f32.mrf.mxu0
  %v249 = vadd.f32 %v208, %v248
  %250 = vmatmul.f32.gmra.mxu0 %v62
  %v251 = vpop.f32.mrf.mxu0
  %v252 = vadd.f32 %v208, %v251
  %253 = vmatmul.f32.gmra.mxu0 %v68
  %v254 = vpop.f32.mrf.mxu0
  %v255 = vadd.f32 %v208, %v254
  %256 = vmatmul.f32.gmra.mxu0 %v74
  %v257 = vpop.f32.mrf.mxu0
  %v258 = vadd.f32 %v208, %v257
  %259 = vmatmul.f32.gmra.mxu0 %v80
  %v260 = vpop.f32.mrf.mxu0
  %v261 = vadd.f32 %v208, %v260
  %262 = vmatmul.f32.gmra.mxu0 %v86
  %v263 = vpop.f32.mrf.mxu0
  %v264 = vadd.f32 %v208, %v263
  %265 = vmatmul.f32.gmra.mxu0 %v92
  %v266 = vpop.f32.mrf.mxu0
  %v267 = vadd.f32 %v208, %v266
  %268 = vmatmul.f32.gmra.mxu0 %v98
  %v269 = vpop.f32.mrf.mxu0
  %v270 = vadd.f32 %v208, %v269
  %271 = vmatmul.f32.gmra.mxu0 %v104
  %v272 = vpop.f32.mrf.mxu0
  %v273 = vadd.f32 %v208, %v272
  %274 = vdwg.mxu0
  %275 = vmatpush.msra.mxu0 %v141
  %276 = vmatpush.msra.mxu0 %v140
  %277 = vmatpush.msra.mxu0 %v139
  %278 = vmatpush.msra.mxu0 %v138
  %279 = vmatpush.msra.mxu0 %v137
  %280 = vmatpush.msra.mxu0 %v136
  %281 = vmatpush.msra.mxu0 %v135
  %282 = vmatpush.msra.mxu0 %v134
  %283 = vmatpush.msra.mxu0 %v133
  %284 = vmatpush.msra.mxu0 %v132
  %285 = vmatpush.msra.mxu0 %v131
  %286 = vmatpush.msra.mxu0 %v130
  %287 = vmatpush.msra.mxu0 %v129
  %288 = vmatpush.msra.mxu0 %v128
  %289 = vmatpush.msra.mxu0 %v127
  %290 = vmatpush.msra.mxu0 %v126
  %291 = vmatmul.f32.gmra.mxu0 %v15
  %v292 = vpop.f32.mrf.mxu0
  %v293 = vadd.f32 %v228, %v292
  %294 = vmatmul.f32.gmra.mxu0 %v21
  %v295 = vpop.f32.mrf.mxu0
  %v296 = vadd.f32 %v231, %v295
  %297 = vmatmul.f32.gmra.mxu0 %v27
  %v298 = vpop.f32.mrf.mxu0
  %v299 = vadd.f32 %v234, %v298
  %300 = vmatmul.f32.gmra.mxu0 %v33
  %v301 = vpop.f32.mrf.mxu0
  %v302 = vadd.f32 %v237, %v301
  %303 = vmatmul.f32.gmra.mxu0 %v39
  %v304 = vpop.f32.mrf.mxu0
  %v305 = vadd.f32 %v240, %v304
  %306 = vmatmul.f32.gmra.mxu0 %v45
  %v307 = vpop.f32.mrf.mxu0
  %v308 = vadd.f32 %v243, %v307
  %309 = vmatmul.f32.gmra.mxu0 %v51
  %v310 = vpop.f32.mrf.mxu0
  %v311 = vadd.f32 %v246, %v310
  %312 = vmatmul.f32.gmra.mxu0 %v57
  %v313 = vpop.f32.mrf.mxu0
  %v314 = vadd.f32 %v249, %v313
  %315 = vmatmul.f32.gmra.mxu0 %v63
  %v316 = vpop.f32.mrf.mxu0
  %v317 = vadd.f32 %v252, %v316
  %318 = vmatmul.f32.gmra.mxu0 %v69
  %v319 = vpop.f32.mrf.mxu0
  %v320 = vadd.f32 %v255, %v319
  %321 = vmatmul.f32.gmra.mxu0 %v75
  %v322 = vpop.f32.mrf.mxu0
  %v323 = vadd.f32 %v258, %v322
  %324 = vmatmul.f32.gmra.mxu0 %v81
  %v325 = vpop.f32.mrf.mxu0
  %v326 = vadd.f32 %v261, %v325
  %327 = vmatmul.f32.gmra.mxu0 %v87
  %v328 = vpop.f32.mrf.mxu0
  %v329 = vadd.f32 %v264, %v328
  %330 = vmatmul.f32.gmra.mxu0 %v93
  %v331 = vpop.f32.mrf.mxu0
  %v332 = vadd.f32 %v267, %v331
  %333 = vmatmul.f32.gmra.mxu0 %v99
  %v334 = vpop.f32.mrf.mxu0
  %v335 = vadd.f32 %v270, %v334
  %336 = vmatmul.f32.gmra.mxu0 %v105
  %v337 = vpop.f32.mrf.mxu0
  %v338 = vadd.f32 %v273, %v337
  %339 = vdwg.mxu0
  %340 = vmatpush.msra.mxu0 %v157
  %341 = vmatpush.msra.mxu0 %v156
  %342 = vmatpush.msra.mxu0 %v155
  %343 = vmatpush.msra.mxu0 %v154
  %344 = vmatpush.msra.mxu0 %v153
  %345 = vmatpush.msra.mxu0 %v152
  %346 = vmatpush.msra.mxu0 %v151
  %347 = vmatpush.msra.mxu0 %v150
  %348 = vmatpush.msra.mxu0 %v149
  %349 = vmatpush.msra.mxu0 %v148
  %350 = vmatpush.msra.mxu0 %v147
  %351 = vmatpush.msra.mxu0 %v146
  %352 = vmatpush.msra.mxu0 %v145
  %353 = vmatpush.msra.mxu0 %v144
  %354 = vmatpush.msra.mxu0 %v143
  %355 = vmatpush.msra.mxu0 %v142
  %356 = vmatmul.f32.gmra.mxu0 %v16
  %v357 = vpop.f32.mrf.mxu0
  %v358 = vadd.f32 %v293, %v357
  %359 = vmatmul.f32.gmra.mxu0 %v22
  %v360 = vpop.f32.mrf.mxu0
  %v361 = vadd.f32 %v296, %v360
  %362 = vmatmul.f32.gmra.mxu0 %v28
  %v363 = vpop.f32.mrf.mxu0
  %v364 = vadd.f32 %v299, %v363
  %365 = vmatmul.f32.gmra.mxu0 %v34
  %v366 = vpop.f32.mrf.mxu0
  %v367 = vadd.f32 %v302, %v366
  %368 = vmatmul.f32.gmra.mxu0 %v40
  %v369 = vpop.f32.mrf.mxu0
  %v370 = vadd.f32 %v305, %v369
  %371 = vmatmul.f32.gmra.mxu0 %v46
  %v372 = vpop.f32.mrf.mxu0
  %v373 = vadd.f32 %v308, %v372
  %374 = vmatmul.f32.gmra.mxu0 %v52
  %v375 = vpop.f32.mrf.mxu0
  %v376 = vadd.f32 %v311, %v375
  %377 = vmatmul.f32.gmra.mxu0 %v58
  %v378 = vpop.f32.mrf.mxu0
  %v379 = vadd.f32 %v314, %v378
  %380 = vmatmul.f32.gmra.mxu0 %v64
  %v381 = vpop.f32.mrf.mxu0
  %v382 = vadd.f32 %v317, %v381
  %383 = vmatmul.f32.gmra.mxu0 %v70
  %v384 = vpop.f32.mrf.mxu0
  %v385 = vadd.f32 %v320, %v384
  %386 = vmatmul.f32.gmra.mxu0 %v76
  %v387 = vpop.f32.mrf.mxu0
  %v388 = vadd.f32 %v323, %v387
  %389 = vmatmul.f32.gmra.mxu0 %v82
  %v390 = vpop.f32.mrf.mxu0
  %v391 = vadd.f32 %v326, %v390
  %392 = vmatmul.f32.gmra.mxu0 %v88
  %v393 = vpop.f32.mrf.mxu0
  %v394 = vadd.f32 %v329, %v393
  %395 = vmatmul.f32.gmra.mxu0 %v94
  %v396 = vpop.f32.mrf.mxu0
  %v397 = vadd.f32 %v332, %v396
  %398 = vmatmul.f32.gmra.mxu0 %v100
  %v399 = vpop.f32.mrf.mxu0
  %v400 = vadd.f32 %v335, %v399
  %401 = vmatmul.f32.gmra.mxu0 %v106
  %v402 = vpop.f32.mrf.mxu0
  %v403 = vadd.f32 %v338, %v402
  %404 = vdwg.mxu0
  %405 = vmatpush.msra.mxu0 %v173
  %406 = vmatpush.msra.mxu0 %v172
  %407 = vmatpush.msra.mxu0 %v171
  %408 = vmatpush.msra.mxu0 %v170
  %409 = vmatpush.msra.mxu0 %v169
  %410 = vmatpush.msra.mxu0 %v168
  %411 = vmatpush.msra.mxu0 %v167
  %412 = vmatpush.msra.mxu0 %v166
  %413 = vmatpush.msra.mxu0 %v165
  %414 = vmatpush.msra.mxu0 %v164
  %415 = vmatpush.msra.mxu0 %v163
  %416 = vmatpush.msra.mxu0 %v162
  %417 = vmatpush.msra.mxu0 %v161
  %418 = vmatpush.msra.mxu0 %v160
  %419 = vmatpush.msra.mxu0 %v159
  %420 = vmatpush.msra.mxu0 %v158
  %421 = vmatmul.f32.gmra.mxu0 %v17
  %v422 = vpop.f32.mrf.mxu0
  %v423 = vadd.f32 %v358, %v422
  %424 = vmatmul.f32.gmra.mxu0 %v23
  %v425 = vpop.f32.mrf.mxu0
  %v426 = vadd.f32 %v361, %v425
  %427 = vmatmul.f32.gmra.mxu0 %v29
  %v428 = vpop.f32.mrf.mxu0
  %v429 = vadd.f32 %v364, %v428
  %430 = vmatmul.f32.gmra.mxu0 %v35
  %v431 = vpop.f32.mrf.mxu0
  %v432 = vadd.f32 %v367, %v431
  %433 = vmatmul.f32.gmra.mxu0 %v41
  %v434 = vpop.f32.mrf.mxu0
  %v435 = vadd.f32 %v370, %v434
  %436 = vmatmul.f32.gmra.mxu0 %v47
  %v437 = vpop.f32.mrf.mxu0
  %v438 = vadd.f32 %v373, %v437
  %439 = vmatmul.f32.gmra.mxu0 %v53
  %v440 = vpop.f32.mrf.mxu0
  %v441 = vadd.f32 %v376, %v440
  %442 = vmatmul.f32.gmra.mxu0 %v59
  %v443 = vpop.f32.mrf.mxu0
  %v444 = vadd.f32 %v379, %v443
  %445 = vmatmul.f32.gmra.mxu0 %v65
  %v446 = vpop.f32.mrf.mxu0
  %v447 = vadd.f32 %v382, %v446
  %448 = vmatmul.f32.gmra.mxu0 %v71
  %v449 = vpop.f32.mrf.mxu0
  %v450 = vadd.f32 %v385, %v449
  %451 = vmatmul.f32.gmra.mxu0 %v77
  %v452 = vpop.f32.mrf.mxu0
  %v453 = vadd.f32 %v388, %v452
  %454 = vmatmul.f32.gmra.mxu0 %v83
  %v455 = vpop.f32.mrf.mxu0
  %v456 = vadd.f32 %v391, %v455
  %457 = vmatmul.f32.gmra.mxu0 %v89
  %v458 = vpop.f32.mrf.mxu0
  %v459 = vadd.f32 %v394, %v458
  %460 = vmatmul.f32.gmra.mxu0 %v95
  %v461 = vpop.f32.mrf.mxu0
  %v462 = vadd.f32 %v397, %v461
  %463 = vmatmul.f32.gmra.mxu0 %v101
  %v464 = vpop.f32.mrf.mxu0
  %v465 = vadd.f32 %v400, %v464
  %466 = vmatmul.f32.gmra.mxu0 %v107
  %v467 = vpop.f32.mrf.mxu0
  %v468 = vadd.f32 %v403, %v467
  %469 = vdwg.mxu0
  %470 = vmatpush.msra.mxu0 %v189
  %471 = vmatpush.msra.mxu0 %v188
  %472 = vmatpush.msra.mxu0 %v187
  %473 = vmatpush.msra.mxu0 %v186
  %474 = vmatpush.msra.mxu0 %v185
  %475 = vmatpush.msra.mxu0 %v184
  %476 = vmatpush.msra.mxu0 %v183
  %477 = vmatpush.msra.mxu0 %v182
  %478 = vmatpush.msra.mxu0 %v181
  %479 = vmatpush.msra.mxu0 %v180
  %480 = vmatpush.msra.mxu0 %v179
  %481 = vmatpush.msra.mxu0 %v178
  %482 = vmatpush.msra.mxu0 %v177
  %483 = vmatpush.msra.mxu0 %v176
  %484 = vmatpush.msra.mxu0 %v175
  %485 = vmatpush.msra.mxu0 %v174
  %486 = vmatmul.f32.gmra.mxu0 %v18
  %v487 = vpop.f32.mrf.mxu0
  %v488 = vadd.f32 %v423, %v487
  %489 = vmatmul.f32.gmra.mxu0 %v24
  %v490 = vpop.f32.mrf.mxu0
  %v491 = vadd.f32 %v426, %v490
  %492 = vmatmul.f32.gmra.mxu0 %v30
  %v493 = vpop.f32.mrf.mxu0
  %v494 = vadd.f32 %v429, %v493
  %495 = vmatmul.f32.gmra.mxu0 %v36
  %v496 = vpop.f32.mrf.mxu0
  %v497 = vadd.f32 %v432, %v496
  %498 = vmatmul.f32.gmra.mxu0 %v42
  %v499 = vpop.f32.mrf.mxu0
  %v500 = vadd.f32 %v435, %v499
  %501 = vmatmul.f32.gmra.mxu0 %v48
  %v502 = vpop.f32.mrf.mxu0
  %v503 = vadd.f32 %v438, %v502
  %504 = vmatmul.f32.gmra.mxu0 %v54
  %v505 = vpop.f32.mrf.mxu0
  %v506 = vadd.f32 %v441, %v505
  %507 = vmatmul.f32.gmra.mxu0 %v60
  %v508 = vpop.f32.mrf.mxu0
  %v509 = vadd.f32 %v444, %v508
  %510 = vmatmul.f32.gmra.mxu0 %v66
  %v511 = vpop.f32.mrf.mxu0
  %v512 = vadd.f32 %v447, %v511
  %513 = vmatmul.f32.gmra.mxu0 %v72
  %v514 = vpop.f32.mrf.mxu0
  %v515 = vadd.f32 %v450, %v514
  %516 = vmatmul.f32.gmra.mxu0 %v78
  %v517 = vpop.f32.mrf.mxu0
  %v518 = vadd.f32 %v453, %v517
  %519 = vmatmul.f32.gmra.mxu0 %v84
  %v520 = vpop.f32.mrf.mxu0
  %v521 = vadd.f32 %v456, %v520
  %522 = vmatmul.f32.gmra.mxu0 %v90
  %v523 = vpop.f32.mrf.mxu0
  %v524 = vadd.f32 %v459, %v523
  %525 = vmatmul.f32.gmra.mxu0 %v96
  %v526 = vpop.f32.mrf.mxu0
  %v527 = vadd.f32 %v462, %v526
  %528 = vmatmul.f32.gmra.mxu0 %v102
  %v529 = vpop.f32.mrf.mxu0
  %v530 = vadd.f32 %v465, %v529
  %531 = vmatmul.f32.gmra.mxu0 %v108
  %v532 = vpop.f32.mrf.mxu0
  %v533 = vadd.f32 %v468, %v532
  %534 = vdwg.mxu0
  %535 = vmatpush.msra.mxu0 %v205
  %536 = vmatpush.msra.mxu0 %v204
  %537 = vmatpush.msra.mxu0 %v203
  %538 = vmatpush.msra.mxu0 %v202
  %539 = vmatpush.msra.mxu0 %v201
  %540 = vmatpush.msra.mxu0 %v200
  %541 = vmatpush.msra.mxu0 %v199
  %542 = vmatpush.msra.mxu0 %v198
  %543 = vmatpush.msra.mxu0 %v197
  %544 = vmatpush.msra.mxu0 %v196
  %545 = vmatpush.msra.mxu0 %v195
  %546 = vmatpush.msra.mxu0 %v194
  %547 = vmatpush.msra.mxu0 %v193
  %548 = vmatpush.msra.mxu0 %v192
  %549 = vmatpush.msra.mxu0 %v191
  %550 = vmatpush.msra.mxu0 %v190
  %551 = vmatmul.f32.gmra.mxu0 %v19
  %v552 = vpop.f32.mrf.mxu0
  %v553 = vadd.f32 %v488, %v552
  %554 = vmatmul.f32.gmra.mxu0 %v25
  %v555 = vpop.f32.mrf.mxu0
  %v556 = vadd.f32 %v491, %v555
  %557 = vmatmul.f32.gmra.mxu0 %v31
  %v558 = vpop.f32.mrf.mxu0
  %v559 = vadd.f32 %v494, %v558
  %560 = vmatmul.f32.gmra.mxu0 %v37
  %v561 = vpop.f32.mrf.mxu0
  %v562 = vadd.f32 %v497, %v561
  %563 = vmatmul.f32.gmra.mxu0 %v43
  %v564 = vpop.f32.mrf.mxu0
  %v565 = vadd.f32 %v500, %v564
  %566 = vmatmul.f32.gmra.mxu0 %v49
  %v567 = vpop.f32.mrf.mxu0
  %v568 = vadd.f32 %v503, %v567
  %569 = vmatmul.f32.gmra.mxu0 %v55
  %v570 = vpop.f32.mrf.mxu0
  %v571 = vadd.f32 %v506, %v570
  %572 = vmatmul.f32.gmra.mxu0 %v61
  %v573 = vpop.f32.mrf.mxu0
  %v574 = vadd.f32 %v509, %v573
  %575 = vmatmul.f32.gmra.mxu0 %v67
  %v576 = vpop.f32.mrf.mxu0
  %v577 = vadd.f32 %v512, %v576
  %578 = vmatmul.f32.gmra.mxu0 %v73
  %v579 = vpop.f32.mrf.mxu0
  %v580 = vadd.f32 %v515, %v579
  %581 = vmatmul.f32.gmra.mxu0 %v79
  %v582 = vpop.f32.mrf.mxu0
  %v583 = vadd.f32 %v518, %v582
  %584 = vmatmul.f32.gmra.mxu0 %v85
  %v585 = vpop.f32.mrf.mxu0
  %v586 = vadd.f32 %v521, %v585
  %587 = vmatmul.f32.gmra.mxu0 %v91
  %v588 = vpop.f32.mrf.mxu0
  %v589 = vadd.f32 %v524, %v588
  %590 = vmatmul.f32.gmra.mxu0 %v97
  %v591 = vpop.f32.mrf.mxu0
  %v592 = vadd.f32 %v527, %v591
  %593 = vmatmul.f32.gmra.mxu0 %v103
  %v594 = vpop.f32.mrf.mxu0
  %v595 = vadd.f32 %v530, %v594
  %596 = vmatmul.f32.gmra.mxu0 %v109
  %v597 = vpop.f32.mrf.mxu0
  %v598 = vadd.f32 %v533, %v597
  %599 = vdwg.mxu0
  %v600 = vand.u32 2147483647, %v553
  %v601 = vand.u32 2147483647, %v556
  %v602 = vand.u32 2147483647, %v559
  %v603 = vand.u32 2147483647, %v562
  %v604 = vand.u32 2147483647, %v565
  %v605 = vand.u32 2147483647, %v568
  %v606 = vand.u32 2147483647, %v571
  %v607 = vand.u32 2147483647, %v574
  %v608 = vand.u32 2147483647, %v577
  %v609 = vand.u32 2147483647, %v580
  %v610 = vand.u32 2147483647, %v583
  %v611 = vand.u32 2147483647, %v586
  %v612 = vand.u32 2147483647, %v589
  %v613 = vand.u32 2147483647, %v592
  %v614 = vand.u32 2147483647, %v595
  %v615 = vand.u32 2147483647, %v598
  %vm616 = vcmp.eq.f32.partialorder %v600, inf
  %vm617 = vcmp.eq.f32.partialorder %v601, inf
  %vm618 = vcmp.eq.f32.partialorder %v602, inf
  %vm619 = vcmp.eq.f32.partialorder %v603, inf
  %vm620 = vcmp.eq.f32.partialorder %v604, inf
  %vm621 = vcmp.eq.f32.partialorder %v605, inf
  %vm622 = vcmp.eq.f32.partialorder %v606, inf
  %vm623 = vcmp.eq.f32.partialorder %v607, inf
  %vm624 = vcmp.eq.f32.partialorder %v608, inf
  %vm625 = vcmp.eq.f32.partialorder %v609, inf
  %vm626 = vcmp.eq.f32.partialorder %v610, inf
  %vm627 = vcmp.eq.f32.partialorder %v611, inf
  %vm628 = vcmp.eq.f32.partialorder %v612, inf
  %vm629 = vcmp.eq.f32.partialorder %v613, inf
  %vm630 = vcmp.eq.f32.partialorder %v614, inf
  %vm631 = vcmp.eq.f32.partialorder %v615, inf
  %v632 = vsel %vm616, 1.0, %v553
  %v633 = vsel %vm617, 1.0, %v556
  %v634 = vsel %vm618, 1.0, %v559
  %v635 = vsel %vm619, 1.0, %v562
  %v636 = vsel %vm620, 1.0, %v565
  %v637 = vsel %vm621, 1.0, %v568
  %v638 = vsel %vm622, 1.0, %v571
  %v639 = vsel %vm623, 1.0, %v574
  %v640 = vsel %vm624, 1.0, %v577
  %v641 = vsel %vm625, 1.0, %v580
  %v642 = vsel %vm626, 1.0, %v583
  %v643 = vsel %vm627, 1.0, %v586
  %v644 = vsel %vm628, 1.0, %v589
  %v645 = vsel %vm629, 1.0, %v592
  %v646 = vsel %vm630, 1.0, %v595
  %v647 = vsel %vm631, 1.0, %v598
  %v648 = vmul.f32 %v632, %v632
  %v649 = vmul.f32 %v633, %v633
  %v650 = vmul.f32 %v634, %v634
  %v651 = vmul.f32 %v635, %v635
  %v652 = vmul.f32 %v636, %v636
  %v653 = vmul.f32 %v637, %v637
  %v654 = vmul.f32 %v638, %v638
  %v655 = vmul.f32 %v639, %v639
  %v656 = vmul.f32 %v640, %v640
  %v657 = vmul.f32 %v641, %v641
  %v658 = vmul.f32 %v642, %v642
  %v659 = vmul.f32 %v643, %v643
  %v660 = vmul.f32 %v644, %v644
  %v661 = vmul.f32 %v645, %v645
  %v662 = vmul.f32 %v646, %v646
  %v663 = vmul.f32 %v647, %v647
  %664 = vadd.xlane.f32.xlu0 %v648
  %v665 = vpop.xlane.xlu0 %664
  %666 = vadd.xlane.f32.xlu0 %v649
  %v667 = vpop.xlane.xlu0 %666
  %668 = vadd.xlane.f32.xlu0 %v650
  %v669 = vpop.xlane.xlu0 %668
  %670 = vadd.xlane.f32.xlu0 %v651
  %v671 = vpop.xlane.xlu0 %670
  %672 = vadd.xlane.f32.xlu0 %v652
  %v673 = vpop.xlane.xlu0 %672
  %674 = vadd.xlane.f32.xlu0 %v653
  %v675 = vpop.xlane.xlu0 %674
  %676 = vadd.xlane.f32.xlu0 %v654
  %v677 = vpop.xlane.xlu0 %676
  %678 = vadd.xlane.f32.xlu0 %v655
  %v679 = vpop.xlane.xlu0 %678
  %680 = vadd.xlane.f32.xlu0 %v656
  %v681 = vpop.xlane.xlu0 %680
  %682 = vadd.xlane.f32.xlu0 %v657
  %v683 = vpop.xlane.xlu0 %682
  %684 = vadd.xlane.f32.xlu0 %v658
  %v685 = vpop.xlane.xlu0 %684
  %686 = vadd.xlane.f32.xlu0 %v659
  %v687 = vpop.xlane.xlu0 %686
  %688 = vadd.xlane.f32.xlu0 %v660
  %v689 = vpop.xlane.xlu0 %688
  %690 = vadd.xlane.f32.xlu0 %v661
  %v691 = vpop.xlane.xlu0 %690
  %692 = vadd.xlane.f32.xlu0 %v662
  %v693 = vpop.xlane.xlu0 %692
  %694 = vadd.xlane.f32.xlu0 %v663
  %v695 = vpop.xlane.xlu0 %694
  %v696 = vmax.f32 %v665, 1e-24
  %v697 = vmax.f32 %v667, 1e-24
  %v698 = vmax.f32 %v669, 1e-24
  %v699 = vmax.f32 %v671, 1e-24
  %v700 = vmax.f32 %v673, 1e-24
  %v701 = vmax.f32 %v675, 1e-24
  %v702 = vmax.f32 %v677, 1e-24
  %v703 = vmax.f32 %v679, 1e-24
  %v704 = vmax.f32 %v681, 1e-24
  %v705 = vmax.f32 %v683, 1e-24
  %v706 = vmax.f32 %v685, 1e-24
  %v707 = vmax.f32 %v687, 1e-24
  %v708 = vmax.f32 %v689, 1e-24
  %v709 = vmax.f32 %v691, 1e-24
  %v710 = vmax.f32 %v693, 1e-24
  %v711 = vmax.f32 %v695, 1e-24
  %v712 = vrsqrt.pop %v696
  %v713 = vmul.f32 %v712, %v696
  %v714 = vmul.f32 %v713, %v712
  %v715 = vmul.f32 0.5, %v714
  %v716 = vsub.f32 1.5, %v715
  %v717 = vmul.f32 %v712, %v716
  %vm718 = vweird.f32 %v696
  %vm719 = vweird.f32 %v712
  %vm720 = vmor %vm718, %vm719
  %v721 = vsel %vm720, %v712, %v717
  %v722 = vrsqrt.pop %v697
  %v723 = vmul.f32 %v722, %v697
  %v724 = vmul.f32 %v723, %v722
  %v725 = vmul.f32 0.5, %v724
  %v726 = vsub.f32 1.5, %v725
  %v727 = vmul.f32 %v722, %v726
  %vm728 = vweird.f32 %v697
  %vm729 = vweird.f32 %v722
  %vm730 = vmor %vm728, %vm729
  %v731 = vsel %vm730, %v722, %v727
  %v732 = vrsqrt.pop %v698
  %v733 = vmul.f32 %v732, %v698
  %v734 = vmul.f32 %v733, %v732
  %v735 = vmul.f32 0.5, %v734
  %v736 = vsub.f32 1.5, %v735
  %v737 = vmul.f32 %v732, %v736
  %vm738 = vweird.f32 %v698
  %vm739 = vweird.f32 %v732
  %vm740 = vmor %vm738, %vm739
  %v741 = vsel %vm740, %v732, %v737
  %v742 = vrsqrt.pop %v699
  %v743 = vmul.f32 %v742, %v699
  %v744 = vmul.f32 %v743, %v742
  %v745 = vmul.f32 0.5, %v744
  %v746 = vsub.f32 1.5, %v745
  %v747 = vmul.f32 %v742, %v746
  %vm748 = vweird.f32 %v699
  %vm749 = vweird.f32 %v742
  %vm750 = vmor %vm748, %vm749
  %v751 = vsel %vm750, %v742, %v747
  %v752 = vrsqrt.pop %v700
  %v753 = vmul.f32 %v752, %v700
  %v754 = vmul.f32 %v753, %v752
  %v755 = vmul.f32 0.5, %v754
  %v756 = vsub.f32 1.5, %v755
  %v757 = vmul.f32 %v752, %v756
  %vm758 = vweird.f32 %v700
  %vm759 = vweird.f32 %v752
  %vm760 = vmor %vm758, %vm759
  %v761 = vsel %vm760, %v752, %v757
  %v762 = vrsqrt.pop %v701
  %v763 = vmul.f32 %v762, %v701
  %v764 = vmul.f32 %v763, %v762
  %v765 = vmul.f32 0.5, %v764
  %v766 = vsub.f32 1.5, %v765
  %v767 = vmul.f32 %v762, %v766
  %vm768 = vweird.f32 %v701
  %vm769 = vweird.f32 %v762
  %vm770 = vmor %vm768, %vm769
  %v771 = vsel %vm770, %v762, %v767
  %v772 = vrsqrt.pop %v702
  %v773 = vmul.f32 %v772, %v702
  %v774 = vmul.f32 %v773, %v772
  %v775 = vmul.f32 0.5, %v774
  %v776 = vsub.f32 1.5, %v775
  %v777 = vmul.f32 %v772, %v776
  %vm778 = vweird.f32 %v702
  %vm779 = vweird.f32 %v772
  %vm780 = vmor %vm778, %vm779
  %v781 = vsel %vm780, %v772, %v777
  %v782 = vrsqrt.pop %v703
  %v783 = vmul.f32 %v782, %v703
  %v784 = vmul.f32 %v783, %v782
  %v785 = vmul.f32 0.5, %v784
  %v786 = vsub.f32 1.5, %v785
  %v787 = vmul.f32 %v782, %v786
  %vm788 = vweird.f32 %v703
  %vm789 = vweird.f32 %v782
  %vm790 = vmor %vm788, %vm789
  %v791 = vsel %vm790, %v782, %v787
  %v792 = vrsqrt.pop %v704
  %v793 = vmul.f32 %v792, %v704
  %v794 = vmul.f32 %v793, %v792
  %v795 = vmul.f32 0.5, %v794
  %v796 = vsub.f32 1.5, %v795
  %v797 = vmul.f32 %v792, %v796
  %vm798 = vweird.f32 %v704
  %vm799 = vweird.f32 %v792
  %vm800 = vmor %vm798, %vm799
  %v801 = vsel %vm800, %v792, %v797
  %v802 = vrsqrt.pop %v705
  %v803 = vmul.f32 %v802, %v705
  %v804 = vmul.f32 %v803, %v802
  %v805 = vmul.f32 0.5, %v804
  %v806 = vsub.f32 1.5, %v805
  %v807 = vmul.f32 %v802, %v806
  %vm808 = vweird.f32 %v705
  %vm809 = vweird.f32 %v802
  %vm810 = vmor %vm808, %vm809
  %v811 = vsel %vm810, %v802, %v807
  %v812 = vrsqrt.pop %v706
  %v813 = vmul.f32 %v812, %v706
  %v814 = vmul.f32 %v813, %v812
  %v815 = vmul.f32 0.5, %v814
  %v816 = vsub.f32 1.5, %v815
  %v817 = vmul.f32 %v812, %v816
  %vm818 = vweird.f32 %v706
  %vm819 = vweird.f32 %v812
  %vm820 = vmor %vm818, %vm819
  %v821 = vsel %vm820, %v812, %v817
  %v822 = vrsqrt.pop %v707
  %v823 = vmul.f32 %v822, %v707
  %v824 = vmul.f32 %v823, %v822
  %v825 = vmul.f32 0.5, %v824
  %v826 = vsub.f32 1.5, %v825
  %v827 = vmul.f32 %v822, %v826
  %vm828 = vweird.f32 %v707
  %vm829 = vweird.f32 %v822
  %vm830 = vmor %vm828, %vm829
  %v831 = vsel %vm830, %v822, %v827
  %v832 = vrsqrt.pop %v708
  %v833 = vmul.f32 %v832, %v708
  %v834 = vmul.f32 %v833, %v832
  %v835 = vmul.f32 0.5, %v834
  %v836 = vsub.f32 1.5, %v835
  %v837 = vmul.f32 %v832, %v836
  %vm838 = vweird.f32 %v708
  %vm839 = vweird.f32 %v832
  %vm840 = vmor %vm838, %vm839
  %v841 = vsel %vm840, %v832, %v837
  %v842 = vrsqrt.pop %v709
  %v843 = vmul.f32 %v842, %v709
  %v844 = vmul.f32 %v843, %v842
  %v845 = vmul.f32 0.5, %v844
  %v846 = vsub.f32 1.5, %v845
  %v847 = vmul.f32 %v842, %v846
  %vm848 = vweird.f32 %v709
  %vm849 = vweird.f32 %v842
  %vm850 = vmor %vm848, %vm849
  %v851 = vsel %vm850, %v842, %v847
  %v852 = vrsqrt.pop %v710
  %v853 = vmul.f32 %v852, %v710
  %v854 = vmul.f32 %v853, %v852
  %v855 = vmul.f32 0.5, %v854
  %v856 = vsub.f32 1.5, %v855
  %v857 = vmul.f32 %v852, %v856
  %vm858 = vweird.f32 %v710
  %vm859 = vweird.f32 %v852
  %vm860 = vmor %vm858, %vm859
  %v861 = vsel %vm860, %v852, %v857
  %v862 = vrsqrt.pop %v711
  %v863 = vmul.f32 %v862, %v711
  %v864 = vmul.f32 %v863, %v862
  %v865 = vmul.f32 0.5, %v864
  %v866 = vsub.f32 1.5, %v865
  %v867 = vmul.f32 %v862, %v866
  %vm868 = vweird.f32 %v711
  %vm869 = vweird.f32 %v862
  %vm870 = vmor %vm868, %vm869
  %v871 = vsel %vm870, %v862, %v867
  %v872 = vmul.f32 %v632, %v721
  %v873 = vmul.f32 %v633, %v731
  %v874 = vmul.f32 %v634, %v741
  %v875 = vmul.f32 %v635, %v751
  %v876 = vmul.f32 %v636, %v761
  %v877 = vmul.f32 %v637, %v771
  %v878 = vmul.f32 %v638, %v781
  %v879 = vmul.f32 %v639, %v791
  %v880 = vmul.f32 %v640, %v801
  %v881 = vmul.f32 %v641, %v811
  %v882 = vmul.f32 %v642, %v821
  %v883 = vmul.f32 %v643, %v831
  %v884 = vmul.f32 %v644, %v841
  %v885 = vmul.f32 %v645, %v851
  %v886 = vmul.f32 %v646, %v861
  %v887 = vmul.f32 %v647, %v871
  %v888 = vlaneseq
  %v889 = vshrl.u32 %v888, 7
  %v890 = vadd.s32 %v889, 8
  %v891 = vadd.s32 %v889, 16
  %v892 = vadd.s32 %v889, 24
  %v893 = vadd.s32 %v889, 32
  %v894 = vadd.s32 %v889, 40
  %v895 = vadd.s32 %v889, 48
  %v896 = vadd.s32 %v889, 56
  %v897 = vadd.s32 %v889, 64
  %v898 = vadd.s32 %v889, 72
  %v899 = vadd.s32 %v889, 80
  %v900 = vadd.s32 %v889, 88
  %v901 = vadd.s32 %v889, 96
  %v902 = vadd.s32 %v889, 104
  %v903 = vadd.s32 %v889, 112
  %v904 = vadd.s32 %v889, 120
  %vm905 = vcmp.lt.s32.totalorder %v889, 5
  %vm906 = vcmp.lt.s32.totalorder %v890, 5
  %vm907 = vcmp.lt.s32.totalorder %v891, 5
  %vm908 = vcmp.lt.s32.totalorder %v892, 5
  %vm909 = vcmp.lt.s32.totalorder %v893, 5
  %vm910 = vcmp.lt.s32.totalorder %v894, 5
  %vm911 = vcmp.lt.s32.totalorder %v895, 5
  %vm912 = vcmp.lt.s32.totalorder %v896, 5
  %vm913 = vcmp.lt.s32.totalorder %v897, 5
  %vm914 = vcmp.lt.s32.totalorder %v898, 5
  %vm915 = vcmp.lt.s32.totalorder %v899, 5
  %vm916 = vcmp.lt.s32.totalorder %v900, 5
  %vm917 = vcmp.lt.s32.totalorder %v901, 5
  %vm918 = vcmp.lt.s32.totalorder %v902, 5
  %vm919 = vcmp.lt.s32.totalorder %v903, 5
  %vm920 = vcmp.lt.s32.totalorder %v904, 5
  %v921 = vsel %vm905, %v872, 0.0
  %v922 = vsel %vm906, %v873, 0.0
  %v923 = vsel %vm907, %v874, 0.0
  %v924 = vsel %vm908, %v875, 0.0
  %v925 = vsel %vm909, %v876, 0.0
  %v926 = vsel %vm910, %v877, 0.0
  %v927 = vsel %vm911, %v878, 0.0
  %v928 = vsel %vm912, %v879, 0.0
  %v929 = vsel %vm913, %v880, 0.0
  %v930 = vsel %vm914, %v881, 0.0
  %v931 = vsel %vm915, %v882, 0.0
  %v932 = vsel %vm916, %v883, 0.0
  %v933 = vsel %vm917, %v884, 0.0
  %v934 = vsel %vm918, %v885, 0.0
  %v935 = vsel %vm919, %v886, 0.0
  %v936 = vsel %vm920, %v887, 0.0
  %937 = vxpose.xlu0.b32.start [1/16] %v921, 128
  %938 = vxpose.xlu0.b32.cont [2/16] %v922, 128
  %939 = vxpose.xlu0.b32.cont [3/16] %v923, 128
  %940 = vxpose.xlu0.b32.cont [4/16] %v924, 128
  %941 = vxpose.xlu0.b32.cont [5/16] %v925, 128
  %942 = vxpose.xlu0.b32.cont [6/16] %v926, 128
  %943 = vxpose.xlu0.b32.cont [7/16] %v927, 128
  %944 = vxpose.xlu0.b32.cont [8/16] %v928, 128
  %945 = vxpose.xlu0.b32.cont [9/16] %v929, 128
  %946 = vxpose.xlu0.b32.cont [10/16] %v930, 128
  %947 = vxpose.xlu0.b32.cont [11/16] %v931, 128
  %948 = vxpose.xlu0.b32.cont [12/16] %v932, 128
  %949 = vxpose.xlu0.b32.cont [13/16] %v933, 128
  %950 = vxpose.xlu0.b32.cont [14/16] %v934, 128
  %951 = vxpose.xlu0.b32.cont [15/16] %v935, 128
  %952 = vxpose.xlu0.b32.end [16/16] %v936, 128
  %v953 = vpop.trf.xlu0
  %v954 = vpop.trf.xlu0
  %v955 = vpop.trf.xlu0
  %v956 = vpop.trf.xlu0
  %v957 = vpop.trf.xlu0
  %v958 = vpop.trf.xlu0
  %v959 = vpop.trf.xlu0
  %v960 = vpop.trf.xlu0
  %v961 = vpop.trf.xlu0
  %v962 = vpop.trf.xlu0
  %v963 = vpop.trf.xlu0
  %v964 = vpop.trf.xlu0
  %v965 = vpop.trf.xlu0
  %v966 = vpop.trf.xlu0
  %v967 = vpop.trf.xlu0
  %v968 = vpop.trf.xlu0
  %969 = vst [vmem:[%s3] sm:$0xff] %v953
  %970 = vst [vmem:[%s3 + $0x8] sm:$0xff] %v954
  %971 = vst [vmem:[%s3 + $0x10] sm:$0xff] %v955
  %972 = vst [vmem:[%s3 + $0x18] sm:$0xff] %v956
  %973 = vst [vmem:[%s3 + $0x20] sm:$0xff] %v957
  %974 = vst [vmem:[%s3 + $0x28] sm:$0xff] %v958
  %975 = vst [vmem:[%s3 + $0x30] sm:$0xff] %v959
  %976 = vst [vmem:[%s3 + $0x38] sm:$0xff] %v960
  %977 = vst [vmem:[%s3 + $0x40] sm:$0xff] %v961
  %978 = vst [vmem:[%s3 + $0x48] sm:$0xff] %v962
  %979 = vst [vmem:[%s3 + $0x50] sm:$0xff] %v963
  %980 = vst [vmem:[%s3 + $0x58] sm:$0xff] %v964
  %981 = vst [vmem:[%s3 + $0x60] sm:$0xff] %v965
  %982 = vst [vmem:[%s3 + $0x68] sm:$0xff] %v966
  %983 = vst [vmem:[%s3 + $0x70] sm:$0xff] %v967
  %984 = vst [vmem:[%s3 + $0x78] sm:$0xff] %v968
  // Predicated region
  $region14: #{fastreid_with_post.2} parent=0 // pred_check
    _
  $region15: #{fastreid_with_post.2} parent=0 // pred_check_branch
    %986 = sbr.rel (0) target = $region17
  $region16: #{fastreid_with_post.2} parent=0 // pred_region
    _
  $region17: #{fastreid_with_post.2} parent=0 // pred_fallthru
    _
  // Predicated region
  $region18: #{fastreid_with_post.2} parent=0 // pred_check
    _
  $region19: #{fastreid_with_post.2} parent=0 // pred_check_branch
    %988 = sbr.rel (0) target = $region21
  $region20: #{fastreid_with_post.2} parent=0 // pred_region
    _
  $region21: #{fastreid_with_post.2} parent=0 // pred_fallthru
    _

</llo_original>
